<compile_context>
chip_gen: v5e
topology: v5e:2x2
jax: 0.10.0
libtpu: 0.0.40
codegen_flags: <defaults>
</compile_context>

<pallas_src>
import jax
import jax.numpy as jnp
from jax import lax
from jax.experimental import pallas as pl
from jax.experimental.pallas import tpu as pltpu


def relax_kernel(x_ref, w_ref, mm_ref, mw_ref, r_ref, u_ref, s_ref):
    """One RELAX grid step: encode [x ; masked x] with a single MXU matmul,
    cosine similarity vs. h_star, then sequential weighted-Welford R/U/S update."""
    # Accumulator init on the first grid step (matches __init__:
    # R = 0, U = 0, sum_of_weights = 1e-10).
    @pl.when(pl.program_id(0) == 0)
    def _():
        r_ref[...] = jnp.zeros_like(r_ref)
        u_ref[...] = jnp.zeros_like(u_ref)
        s_ref[...] = jnp.full_like(s_ref, 1e-10)

    x = x_ref[...]                       # (C, HW)   f32, grid-invariant
    m_aug = mm_ref[0]                    # (M+1, HW) f32, row 0 == 1.0 (h_star row)
    C = x.shape[0]
    M = m_aug.shape[0] - 1

    # --- Fused encoder matmul: one MXU call, M+1 rows, K = C*HW, bf16 inputs. ---
    # lhs[r, c*HW + p] = m_aug[r, p] * x[c, p]
    lhs = jnp.concatenate([m_aug * x[c:c + 1, :] for c in range(C)], axis=1)
    h_all = jnp.dot(lhs.astype(jnp.bfloat16), w_ref[...],
                    preferred_element_type=jnp.float32)        # (M+1, D) f32
    h_star = h_all[0:1, :]                                      # (1, D)
    h = h_all[1:, :]                                            # (M, D)

    # --- Cosine similarity (clamp each norm, as torch.nn.CosineSimilarity). ---
    eps = 1e-8
    dots = jnp.sum(h * h_star, axis=-1, keepdims=True)                    # (M, 1)
    n_star = jnp.sqrt(jnp.sum(h_star * h_star, axis=-1, keepdims=True))   # (1, 1)
    n_h = jnp.sqrt(jnp.sum(h * h, axis=-1, keepdims=True))                # (M, 1)
    sims = dots / (jnp.maximum(n_star, eps) * jnp.maximum(n_h, eps))      # (M, 1)

    # --- Sequential weighted Welford update over the M samples of this step. ---
    #   S = S + m_i
    #   R = R + m_i * (s_i - R) / S
    #   U = U + (s_i - R_new) * (s_i - R_prev) * m_i
    # R/U/S and mask slices are (HW//128, 128): sublane+lane dense vregs.
    R = r_ref[...]
    U = u_ref[...]
    S = s_ref[...]
    for b in range(M):
        mi = mw_ref[0, b]                # (HW//128, 128)
        si = sims[b:b + 1, :]            # (1, 1) -> broadcasts over pixels
        S = S + mi
        R_prev = R
        R = R + (mi * (si - R)) * pl.reciprocal(S, approx=True)
        U = U + (si - R) * (si - R_prev) * mi

    r_ref[...] = R
    u_ref[...] = U
    s_ref[...] = S


def relax_forward(x, w_enc, masks_all, masks_per_step=None):
    """Run the RELAX loop in a single pallas_call.

    x:         (1, C, H, W)              float32 -- the image being explained
    w_enc:     (C*H*W, D)                float32 -- synthetic linear encoder weights
    masks_all: (num_batches, B, H, W)    float32 -- pre-generated RELAX masks

    Returns (R, U, S) each of shape (H, W) float32.
    """
    _, C, H, W = x.shape
    HW = H * W
    assert HW % 128 == 0, "pixel count must be a multiple of 128 for the dense layout"
    D = w_enc.shape[1]
    num_batches, B = masks_all.shape[:2]
    n_total = num_batches * B

    # Fat MXU M dimension: process up to 128 masks per grid step (v5e MXU width;
    # v6e/v7x could go to 256). Exact sequential sample order is preserved.
    if masks_per_step is None:
        masks_per_step = min(n_total, 128)
    assert n_total % masks_per_step == 0, "masks_per_step must divide num_batches*B"
    M = masks_per_step
    n_steps = n_total // M
    PS = HW // 128                                   # pixel sublane tiles

    x2d = x.reshape(C, HW).astype(jnp.float32)
    w2d = w_enc.reshape(C * HW, D).astype(jnp.bfloat16)

    masks_flat = masks_all.reshape(n_total, HW).astype(jnp.float32)
    masks_chunks = masks_flat.reshape(n_steps, M, HW)
    # Flat layout for the matmul path, with a leading all-ones row (=> h_star row).
    ones_row = jnp.ones((n_steps, 1, HW), jnp.float32)
    masks_mm = jnp.concatenate([ones_row, masks_chunks], axis=1)     # (n_steps, M+1, HW)
    # Sublane/lane-dense layout for the per-pixel Welford path.
    masks_wf = masks_chunks.reshape(n_steps, M, PS, 128)             # (n_steps, M, PS, 128)

    grid_spec = pltpu.PrefetchScalarGridSpec(
        num_scalar_prefetch=0,
        grid=(n_steps,),
        in_specs=[
            pl.BlockSpec((C, HW), lambda i: (0, 0)),             # x: grid-invariant
            pl.BlockSpec((C * HW, D), lambda i: (0, 0)),         # encoder weights (bf16)
            pl.BlockSpec((1, M + 1, HW), lambda i: (i, 0, 0)),   # masks, matmul layout
            pl.BlockSpec((1, M, PS, 128), lambda i: (i, 0, 0, 0)),  # masks, Welford layout
        ],
        out_specs=[
            pl.BlockSpec((PS, 128), lambda i: (0, 0)),           # R (accumulator)
            pl.BlockSpec((PS, 128), lambda i: (0, 0)),           # U (accumulator)
            pl.BlockSpec((PS, 128), lambda i: (0, 0)),           # sum_of_weights
        ],
    )

    R, U, S = pl.pallas_call(
        relax_kernel,
        out_shape=[
            jax.ShapeDtypeStruct((PS, 128), jnp.float32),
            jax.ShapeDtypeStruct((PS, 128), jnp.float32),
            jax.ShapeDtypeStruct((PS, 128), jnp.float32),
        ],
        grid_spec=grid_spec,
        compiler_params=pltpu.CompilerParams(
            dimension_semantics=("arbitrary",),       # R/U/S resident accumulators
            vmem_limit_bytes=64 * 1024 * 1024,
        ),
    )(x2d, w2d, masks_mm, masks_wf)

    return R.reshape(H, W), U.reshape(H, W), S.reshape(H, W)


def mask_generator(key, batch_size, shape, num_cells=7, p=0.5):
    """JAX port of RELAX.mask_generator (random grid -> bilinear upsample ->
    reflect pad -> random shifted crop). Plain-JAX glue (pure data generation)."""
    H, W = shape
    pad = num_cells // 2
    kgrid, ksx, ksy = jax.random.split(key, 3)
    grid = (jax.random.uniform(kgrid, (batch_size, 1, num_cells, num_cells))
            < p).astype(jnp.float32)
    # jax.image.resize 'bilinear' uses half-pixel centers == align_corners=False.
    grid_up = jax.image.resize(grid, (batch_size, 1, H, W), method="bilinear")
    grid_up = jnp.pad(grid_up, ((0, 0), (0, 0), (pad, pad), (pad, pad)),
                      mode="reflect")
    shift_x = jax.random.randint(ksx, (batch_size,), 0, num_cells)
    shift_y = jax.random.randint(ksy, (batch_size,), 0, num_cells)

    def crop(g, sx, sy):
        return lax.dynamic_slice(g, (0, sx, sy), (1, H, W))

    masks = jax.vmap(crop)(grid_up, shift_x, shift_y)   # (B, 1, H, W)
    return masks[:, 0]                                  # (B, H, W)


if __name__ == "__main__":
    # Small shapes consistent with the module.
    C, H, W = 3, 16, 16
    D = 32                 # encoder feature dim
    batch_size = 8
    num_batches = 4        # 32 masks total

    key = jax.random.PRNGKey(0)
    kx, kw, kmask = jax.random.split(key, 3)

    x = jax.random.normal(kx, (1, C, H, W), jnp.float32)
    # Deterministic synthetic linear encoder f(z) = flatten(z) @ W_enc.
    w_enc = 0.02 * jax.random.normal(kw, (C * H * W, D), jnp.float32)

    # Pre-generate all RELAX masks (num_batches, B, H, W).
    mask_keys = jax.random.split(kmask, num_batches)
    masks_all = jnp.stack(
        [mask_generator(k, batch_size, (H, W)) for k in mask_keys], axis=0)

    # masks_per_step=16 -> 2 grid steps of M=17-row fused matmuls (exercises both
    # the fat-M matmul and the resident R/U/S accumulation across the grid).
    R, U, S = relax_forward(x, w_enc, masks_all, masks_per_step=16)
    importance = R                       # RELAX.importance()
    uncertainty = U / (S - 1.0)          # RELAX.uncertainty()

    jax.block_until_ready((importance, uncertainty, S))
    assert bool(jnp.all(jnp.isfinite(importance))) and bool(jnp.all(jnp.isfinite(uncertainty)))
    print("KERNEL_OK")
</pallas_src>

<mosaic_0001>
module attributes {stable_mosaic.version = 11 : i64} {
  func.func @relax_kernel(%arg0: i32, %arg1: memref<3x256xf32, #tpu.memory_space<vmem>>, %arg2: memref<768x32xbf16, #tpu.memory_space<vmem>>, %arg3: memref<1x17x256xf32, #tpu.memory_space<vmem>>, %arg4: memref<1x16x2x128xf32, #tpu.memory_space<vmem>>, %arg5: memref<2x128xf32, #tpu.memory_space<vmem>>, %arg6: memref<2x128xf32, #tpu.memory_space<vmem>>, %arg7: memref<2x128xf32, #tpu.memory_space<vmem>>) attributes {dimension_semantics = [#tpu.dimension_semantics<arbitrary>], iteration_bounds = array<i64: 2>, scalar_prefetch = 0 : i64, scratch_operands = 0 : i64, tpu.core_type = #tpu.core_type<tc>, window_params = [{pipeline_mode = #tpu.pipeline_mode<synchronous>, transform_indices = @transform_0, window_bounds = array<i64: 3, 256>}, {pipeline_mode = #tpu.pipeline_mode<synchronous>, transform_indices = @transform_1, window_bounds = array<i64: 768, 32>}, {transform_indices = @transform_2, window_bounds = array<i64: 1, 17, 256>}, {transform_indices = @transform_3, window_bounds = array<i64: 1, 16, 2, 128>}, {pipeline_mode = #tpu.pipeline_mode<synchronous>, transform_indices = @transform_4, window_bounds = array<i64: 2, 128>}, {pipeline_mode = #tpu.pipeline_mode<synchronous>, transform_indices = @transform_5, window_bounds = array<i64: 2, 128>}, {pipeline_mode = #tpu.pipeline_mode<synchronous>, transform_indices = @transform_6, window_bounds = array<i64: 2, 128>}]} {
    %c0_i32 = arith.constant 0 : i32
    %0 = arith.cmpi eq, %arg0, %c0_i32 : i32
    %1 = arith.extui %0 : i1 to i32
    %c0_i32_0 = arith.constant 0 : i32
    %2 = arith.cmpi ne, %1, %c0_i32_0 : i32
    scf.if %2 {
      %cst_73 = arith.constant 0.000000e+00 : f32
      %318 = vector.broadcast %cst_73 : f32 to vector<2x128xf32>
      %c0_74 = arith.constant 0 : index
      %c0_75 = arith.constant 0 : index
      %319 = vector.load %arg5[%c0_74, %c0_75] : memref<2x128xf32, #tpu.memory_space<vmem>>, vector<2x128xf32>
      tpu.vector_store %arg5[%c0_74, %c0_75], %318 {strides = array<i32>} : memref<2x128xf32, #tpu.memory_space<vmem>>, vector<2x128xf32>,
      %cst_76 = arith.constant 0.000000e+00 : f32
      %320 = vector.broadcast %cst_76 : f32 to vector<2x128xf32>
      %c0_77 = arith.constant 0 : index
      %c0_78 = arith.constant 0 : index
      %321 = vector.load %arg6[%c0_77, %c0_78] : memref<2x128xf32, #tpu.memory_space<vmem>>, vector<2x128xf32>
      tpu.vector_store %arg6[%c0_77, %c0_78], %320 {strides = array<i32>} : memref<2x128xf32, #tpu.memory_space<vmem>>, vector<2x128xf32>,
      %cst_79 = arith.constant 1.000000e-10 : f32
      %322 = vector.broadcast %cst_79 : f32 to vector<2x128xf32>
      %c0_80 = arith.constant 0 : index
      %c0_81 = arith.constant 0 : index
      %323 = vector.load %arg7[%c0_80, %c0_81] : memref<2x128xf32, #tpu.memory_space<vmem>>, vector<2x128xf32>
      tpu.vector_store %arg7[%c0_80, %c0_81], %322 {strides = array<i32>} : memref<2x128xf32, #tpu.memory_space<vmem>>, vector<2x128xf32>,
    } else {
    }
    %c0 = arith.constant 0 : index
    %c0_1 = arith.constant 0 : index
    %3 = vector.load %arg1[%c0, %c0_1] : memref<3x256xf32, #tpu.memory_space<vmem>>, vector<3x256xf32>
    %c0_2 = arith.constant 0 : index
    %c0_3 = arith.constant 0 : index
    %c0_4 = arith.constant 0 : index
    %4 = vector.load %arg3[%c0_2, %c0_3, %c0_4] : memref<1x17x256xf32, #tpu.memory_space<vmem>>, vector<1x17x256xf32>
    %5 = vector.shape_cast %4 : vector<1x17x256xf32> to vector<17x256xf32>
    %6 = vector.extract_strided_slice %3 {offsets = [0, 0], sizes = [1, 256], strides = [1, 1]} : vector<3x256xf32> to vector<1x256xf32>
    %7 = vector.broadcast %6 : vector<1x256xf32> to vector<17x256xf32>
    %8 = arith.mulf %5, %7 : vector<17x256xf32>
    %9 = vector.extract_strided_slice %3 {offsets = [1, 0], sizes = [1, 256], strides = [1, 1]} : vector<3x256xf32> to vector<1x256xf32>
    %10 = vector.broadcast %9 : vector<1x256xf32> to vector<17x256xf32>
    %11 = arith.mulf %5, %10 : vector<17x256xf32>
    %12 = vector.extract_strided_slice %3 {offsets = [2, 0], sizes = [1, 256], strides = [1, 1]} : vector<3x256xf32> to vector<1x256xf32>
    %13 = vector.broadcast %12 : vector<1x256xf32> to vector<17x256xf32>
    %14 = arith.mulf %5, %13 : vector<17x256xf32>
    %15 = tpu.concatenate %8, %11, %14 in 1 : vector<17x256xf32>, vector<17x256xf32>, vector<17x256xf32> -> vector<17x768xf32>
    %16 = arith.truncf %15 : vector<17x768xf32> to vector<17x768xbf16>
    %c0_5 = arith.constant 0 : index
    %c0_6 = arith.constant 0 : index
    %17 = vector.load %arg2[%c0_5, %c0_6] : memref<768x32xbf16, #tpu.memory_space<vmem>>, vector<768x32xbf16>
    %cst = arith.constant dense<0.000000e+00> : vector<17x32xf32>
    %18 = tpu.matmul %16, %17, %cst {dimension_numbers = #tpu.dot_dimension_numbers<[1], [0], [0], [1], [0, 0, 1, 1], [], []>} : vector<17x768xbf16>, vector<768x32xbf16>, vector<17x32xf32> -> vector<17x32xf32>
    %19 = vector.extract_strided_slice %18 {offsets = [0, 0], sizes = [1, 32], strides = [1, 1]} : vector<17x32xf32> to vector<1x32xf32>
    %20 = vector.extract_strided_slice %18 {offsets = [1, 0], sizes = [16, 32], strides = [1, 1]} : vector<17x32xf32> to vector<16x32xf32>
    %21 = vector.broadcast %19 : vector<1x32xf32> to vector<16x32xf32>
    %22 = arith.mulf %20, %21 : vector<16x32xf32>
    %cst_7 = arith.constant dense<0.000000e+00> : vector<16xf32>
    %23 = vector.multi_reduction <add>, %22, %cst_7 [1] : vector<16x32xf32> to vector<16xf32>
    %24 = vector.shape_cast %23 : vector<16xf32> to vector<16x1xf32>
    %25 = arith.mulf %19, %19 : vector<1x32xf32>
    %cst_8 = arith.constant dense<0.000000e+00> : vector<1xf32>
    %26 = vector.multi_reduction <add>, %25, %cst_8 [1] : vector<1x32xf32> to vector<1xf32>
    %27 = vector.shape_cast %26 : vector<1xf32> to vector<1x1xf32>
    %28 = math.sqrt %27 : vector<1x1xf32>
    %29 = arith.mulf %20, %20 : vector<16x32xf32>
    %cst_9 = arith.constant dense<0.000000e+00> : vector<16xf32>
    %30 = vector.multi_reduction <add>, %29, %cst_9 [1] : vector<16x32xf32> to vector<16xf32>
    %31 = vector.shape_cast %30 : vector<16xf32> to vector<16x1xf32>
    %32 = math.sqrt %31 : vector<16x1xf32>
    %cst_10 = arith.constant 9.99999993E-9 : f32
    %33 = vector.broadcast %cst_10 : f32 to vector<1x1xf32>
    %34 = arith.maximumf %28, %33 : vector<1x1xf32>
    %cst_11 = arith.constant 9.99999993E-9 : f32
    %35 = vector.broadcast %cst_11 : f32 to vector<16x1xf32>
    %36 = arith.maximumf %32, %35 : vector<16x1xf32>
    %37 = vector.broadcast %34 : vector<1x1xf32> to vector<16x1xf32>
    %38 = arith.mulf %37, %36 : vector<16x1xf32>
    %39 = arith.divf %24, %38 : vector<16x1xf32>
    %c0_12 = arith.constant 0 : index
    %c0_13 = arith.constant 0 : index
    %40 = vector.load %arg5[%c0_12, %c0_13] : memref<2x128xf32, #tpu.memory_space<vmem>>, vector<2x128xf32>
    %c0_14 = arith.constant 0 : index
    %c0_15 = arith.constant 0 : index
    %41 = vector.load %arg6[%c0_14, %c0_15] : memref<2x128xf32, #tpu.memory_space<vmem>>, vector<2x128xf32>
    %c0_16 = arith.constant 0 : index
    %c0_17 = arith.constant 0 : index
    %42 = vector.load %arg7[%c0_16, %c0_17] : memref<2x128xf32, #tpu.memory_space<vmem>>, vector<2x128xf32>
    %c0_18 = arith.constant 0 : index
    %c0_19 = arith.constant 0 : index
    %c0_20 = arith.constant 0 : index
    %c0_21 = arith.constant 0 : index
    %43 = vector.load %arg4[%c0_18, %c0_19, %c0_20, %c0_21] : memref<1x16x2x128xf32, #tpu.memory_space<vmem>>, vector<1x1x2x128xf32>
    %44 = vector.shape_cast %43 : vector<1x1x2x128xf32> to vector<2x128xf32>
    %45 = vector.extract_strided_slice %39 {offsets = [0, 0], sizes = [1, 1], strides = [1, 1]} : vector<16x1xf32> to vector<1x1xf32>
    %46 = arith.addf %42, %44 : vector<2x128xf32>
    %47 = vector.broadcast %45 : vector<1x1xf32> to vector<2x128xf32>
    %48 = arith.subf %47, %40 : vector<2x128xf32>
    %49 = arith.mulf %44, %48 : vector<2x128xf32>
    %50 = tpu.reciprocal %46 {approx = true} : vector<2x128xf32> -> vector<2x128xf32>
    %51 = arith.mulf %49, %50 : vector<2x128xf32>
    %52 = arith.addf %40, %51 : vector<2x128xf32>
    %53 = vector.broadcast %45 : vector<1x1xf32> to vector<2x128xf32>
    %54 = arith.subf %53, %52 : vector<2x128xf32>
    %55 = vector.broadcast %45 : vector<1x1xf32> to vector<2x128xf32>
    %56 = arith.subf %55, %40 : vector<2x128xf32>
    %57 = arith.mulf %54, %56 : vector<2x128xf32>
    %58 = arith.mulf %57, %44 : vector<2x128xf32>
    %59 = arith.addf %41, %58 : vector<2x128xf32>
    %c0_22 = arith.constant 0 : index
    %c1 = arith.constant 1 : index
    %c0_23 = arith.constant 0 : index
    %c0_24 = arith.constant 0 : index
    %60 = vector.load %arg4[%c0_22, %c1, %c0_23, %c0_24] : memref<1x16x2x128xf32, #tpu.memory_space<vmem>>, vector<1x1x2x128xf32>
    %61 = vector.shape_cast %60 : vector<1x1x2x128xf32> to vector<2x128xf32>
    %62 = vector.extract_strided_slice %39 {offsets = [1, 0], sizes = [1, 1], strides = [1, 1]} : vector<16x1xf32> to vector<1x1xf32>
    %63 = arith.addf %46, %61 : vector<2x128xf32>
    %64 = vector.broadcast %62 : vector<1x1xf32> to vector<2x128xf32>
    %65 = arith.subf %64, %52 : vector<2x128xf32>
    %66 = arith.mulf %61, %65 : vector<2x128xf32>
    %67 = tpu.reciprocal %63 {approx = true} : vector<2x128xf32> -> vector<2x128xf32>
    %68 = arith.mulf %66, %67 : vector<2x128xf32>
    %69 = arith.addf %52, %68 : vector<2x128xf32>
    %70 = vector.broadcast %62 : vector<1x1xf32> to vector<2x128xf32>
    %71 = arith.subf %70, %69 : vector<2x128xf32>
    %72 = vector.broadcast %62 : vector<1x1xf32> to vector<2x128xf32>
    %73 = arith.subf %72, %52 : vector<2x128xf32>
    %74 = arith.mulf %71, %73 : vector<2x128xf32>
    %75 = arith.mulf %74, %61 : vector<2x128xf32>
    %76 = arith.addf %59, %75 : vector<2x128xf32>
    %c0_25 = arith.constant 0 : index
    %c2 = arith.constant 2 : index
    %c0_26 = arith.constant 0 : index
    %c0_27 = arith.constant 0 : index
    %77 = vector.load %arg4[%c0_25, %c2, %c0_26, %c0_27] : memref<1x16x2x128xf32, #tpu.memory_space<vmem>>, vector<1x1x2x128xf32>
    %78 = vector.shape_cast %77 : vector<1x1x2x128xf32> to vector<2x128xf32>
    %79 = vector.extract_strided_slice %39 {offsets = [2, 0], sizes = [1, 1], strides = [1, 1]} : vector<16x1xf32> to vector<1x1xf32>
    %80 = arith.addf %63, %78 : vector<2x128xf32>
    %81 = vector.broadcast %79 : vector<1x1xf32> to vector<2x128xf32>
    %82 = arith.subf %81, %69 : vector<2x128xf32>
    %83 = arith.mulf %78, %82 : vector<2x128xf32>
    %84 = tpu.reciprocal %80 {approx = true} : vector<2x128xf32> -> vector<2x128xf32>
    %85 = arith.mulf %83, %84 : vector<2x128xf32>
    %86 = arith.addf %69, %85 : vector<2x128xf32>
    %87 = vector.broadcast %79 : vector<1x1xf32> to vector<2x128xf32>
    %88 = arith.subf %87, %86 : vector<2x128xf32>
    %89 = vector.broadcast %79 : vector<1x1xf32> to vector<2x128xf32>
    %90 = arith.subf %89, %69 : vector<2x128xf32>
    %91 = arith.mulf %88, %90 : vector<2x128xf32>
    %92 = arith.mulf %91, %78 : vector<2x128xf32>
    %93 = arith.addf %76, %92 : vector<2x128xf32>
    %c0_28 = arith.constant 0 : index
    %c3 = arith.constant 3 : index
    %c0_29 = arith.constant 0 : index
    %c0_30 = arith.constant 0 : index
    %94 = vector.load %arg4[%c0_28, %c3, %c0_29, %c0_30] : memref<1x16x2x128xf32, #tpu.memory_space<vmem>>, vector<1x1x2x128xf32>
    %95 = vector.shape_cast %94 : vector<1x1x2x128xf32> to vector<2x128xf32>
    %96 = vector.extract_strided_slice %39 {offsets = [3, 0], sizes = [1, 1], strides = [1, 1]} : vector<16x1xf32> to vector<1x1xf32>
    %97 = arith.addf %80, %95 : vector<2x128xf32>
    %98 = vector.broadcast %96 : vector<1x1xf32> to vector<2x128xf32>
    %99 = arith.subf %98, %86 : vector<2x128xf32>
    %100 = arith.mulf %95, %99 : vector<2x128xf32>
    %101 = tpu.reciprocal %97 {approx = true} : vector<2x128xf32> -> vector<2x128xf32>
    %102 = arith.mulf %100, %101 : vector<2x128xf32>
    %103 = arith.addf %86, %102 : vector<2x128xf32>
    %104 = vector.broadcast %96 : vector<1x1xf32> to vector<2x128xf32>
    %105 = arith.subf %104, %103 : vector<2x128xf32>
    %106 = vector.broadcast %96 : vector<1x1xf32> to vector<2x128xf32>
    %107 = arith.subf %106, %86 : vector<2x128xf32>
    %108 = arith.mulf %105, %107 : vector<2x128xf32>
    %109 = arith.mulf %108, %95 : vector<2x128xf32>
    %110 = arith.addf %93, %109 : vector<2x128xf32>
    %c0_31 = arith.constant 0 : index
    %c4 = arith.constant 4 : index
    %c0_32 = arith.constant 0 : index
    %c0_33 = arith.constant 0 : index
    %111 = vector.load %arg4[%c0_31, %c4, %c0_32, %c0_33] : memref<1x16x2x128xf32, #tpu.memory_space<vmem>>, vector<1x1x2x128xf32>
    %112 = vector.shape_cast %111 : vector<1x1x2x128xf32> to vector<2x128xf32>
    %113 = vector.extract_strided_slice %39 {offsets = [4, 0], sizes = [1, 1], strides = [1, 1]} : vector<16x1xf32> to vector<1x1xf32>
    %114 = arith.addf %97, %112 : vector<2x128xf32>
    %115 = vector.broadcast %113 : vector<1x1xf32> to vector<2x128xf32>
    %116 = arith.subf %115, %103 : vector<2x128xf32>
    %117 = arith.mulf %112, %116 : vector<2x128xf32>
    %118 = tpu.reciprocal %114 {approx = true} : vector<2x128xf32> -> vector<2x128xf32>
    %119 = arith.mulf %117, %118 : vector<2x128xf32>
    %120 = arith.addf %103, %119 : vector<2x128xf32>
    %121 = vector.broadcast %113 : vector<1x1xf32> to vector<2x128xf32>
    %122 = arith.subf %121, %120 : vector<2x128xf32>
    %123 = vector.broadcast %113 : vector<1x1xf32> to vector<2x128xf32>
    %124 = arith.subf %123, %103 : vector<2x128xf32>
    %125 = arith.mulf %122, %124 : vector<2x128xf32>
    %126 = arith.mulf %125, %112 : vector<2x128xf32>
    %127 = arith.addf %110, %126 : vector<2x128xf32>
    %c0_34 = arith.constant 0 : index
    %c5 = arith.constant 5 : index
    %c0_35 = arith.constant 0 : index
    %c0_36 = arith.constant 0 : index
    %128 = vector.load %arg4[%c0_34, %c5, %c0_35, %c0_36] : memref<1x16x2x128xf32, #tpu.memory_space<vmem>>, vector<1x1x2x128xf32>
    %129 = vector.shape_cast %128 : vector<1x1x2x128xf32> to vector<2x128xf32>
    %130 = vector.extract_strided_slice %39 {offsets = [5, 0], sizes = [1, 1], strides = [1, 1]} : vector<16x1xf32> to vector<1x1xf32>
    %131 = arith.addf %114, %129 : vector<2x128xf32>
    %132 = vector.broadcast %130 : vector<1x1xf32> to vector<2x128xf32>
    %133 = arith.subf %132, %120 : vector<2x128xf32>
    %134 = arith.mulf %129, %133 : vector<2x128xf32>
    %135 = tpu.reciprocal %131 {approx = true} : vector<2x128xf32> -> vector<2x128xf32>
    %136 = arith.mulf %134, %135 : vector<2x128xf32>
    %137 = arith.addf %120, %136 : vector<2x128xf32>
    %138 = vector.broadcast %130 : vector<1x1xf32> to vector<2x128xf32>
    %139 = arith.subf %138, %137 : vector<2x128xf32>
    %140 = vector.broadcast %130 : vector<1x1xf32> to vector<2x128xf32>
    %141 = arith.subf %140, %120 : vector<2x128xf32>
    %142 = arith.mulf %139, %141 : vector<2x128xf32>
    %143 = arith.mulf %142, %129 : vector<2x128xf32>
    %144 = arith.addf %127, %143 : vector<2x128xf32>
    %c0_37 = arith.constant 0 : index
    %c6 = arith.constant 6 : index
    %c0_38 = arith.constant 0 : index
    %c0_39 = arith.constant 0 : index
    %145 = vector.load %arg4[%c0_37, %c6, %c0_38, %c0_39] : memref<1x16x2x128xf32, #tpu.memory_space<vmem>>, vector<1x1x2x128xf32>
    %146 = vector.shape_cast %145 : vector<1x1x2x128xf32> to vector<2x128xf32>
    %147 = vector.extract_strided_slice %39 {offsets = [6, 0], sizes = [1, 1], strides = [1, 1]} : vector<16x1xf32> to vector<1x1xf32>
    %148 = arith.addf %131, %146 : vector<2x128xf32>
    %149 = vector.broadcast %147 : vector<1x1xf32> to vector<2x128xf32>
    %150 = arith.subf %149, %137 : vector<2x128xf32>
    %151 = arith.mulf %146, %150 : vector<2x128xf32>
    %152 = tpu.reciprocal %148 {approx = true} : vector<2x128xf32> -> vector<2x128xf32>
    %153 = arith.mulf %151, %152 : vector<2x128xf32>
    %154 = arith.addf %137, %153 : vector<2x128xf32>
    %155 = vector.broadcast %147 : vector<1x1xf32> to vector<2x128xf32>
    %156 = arith.subf %155, %154 : vector<2x128xf32>
    %157 = vector.broadcast %147 : vector<1x1xf32> to vector<2x128xf32>
    %158 = arith.subf %157, %137 : vector<2x128xf32>
    %159 = arith.mulf %156, %158 : vector<2x128xf32>
    %160 = arith.mulf %159, %146 : vector<2x128xf32>
    %161 = arith.addf %144, %160 : vector<2x128xf32>
    %c0_40 = arith.constant 0 : index
    %c7 = arith.constant 7 : index
    %c0_41 = arith.constant 0 : index
    %c0_42 = arith.constant 0 : index
    %162 = vector.load %arg4[%c0_40, %c7, %c0_41, %c0_42] : memref<1x16x2x128xf32, #tpu.memory_space<vmem>>, vector<1x1x2x128xf32>
    %163 = vector.shape_cast %162 : vector<1x1x2x128xf32> to vector<2x128xf32>
    %164 = vector.extract_strided_slice %39 {offsets = [7, 0], sizes = [1, 1], strides = [1, 1]} : vector<16x1xf32> to vector<1x1xf32>
    %165 = arith.addf %148, %163 : vector<2x128xf32>
    %166 = vector.broadcast %164 : vector<1x1xf32> to vector<2x128xf32>
    %167 = arith.subf %166, %154 : vector<2x128xf32>
    %168 = arith.mulf %163, %167 : vector<2x128xf32>
    %169 = tpu.reciprocal %165 {approx = true} : vector<2x128xf32> -> vector<2x128xf32>
    %170 = arith.mulf %168, %169 : vector<2x128xf32>
    %171 = arith.addf %154, %170 : vector<2x128xf32>
    %172 = vector.broadcast %164 : vector<1x1xf32> to vector<2x128xf32>
    %173 = arith.subf %172, %171 : vector<2x128xf32>
    %174 = vector.broadcast %164 : vector<1x1xf32> to vector<2x128xf32>
    %175 = arith.subf %174, %154 : vector<2x128xf32>
    %176 = arith.mulf %173, %175 : vector<2x128xf32>
    %177 = arith.mulf %176, %163 : vector<2x128xf32>
    %178 = arith.addf %161, %177 : vector<2x128xf32>
    %c0_43 = arith.constant 0 : index
    %c8 = arith.constant 8 : index
    %c0_44 = arith.constant 0 : index
    %c0_45 = arith.constant 0 : index
    %179 = vector.load %arg4[%c0_43, %c8, %c0_44, %c0_45] : memref<1x16x2x128xf32, #tpu.memory_space<vmem>>, vector<1x1x2x128xf32>
    %180 = vector.shape_cast %179 : vector<1x1x2x128xf32> to vector<2x128xf32>
    %181 = vector.extract_strided_slice %39 {offsets = [8, 0], sizes = [1, 1], strides = [1, 1]} : vector<16x1xf32> to vector<1x1xf32>
    %182 = arith.addf %165, %180 : vector<2x128xf32>
    %183 = vector.broadcast %181 : vector<1x1xf32> to vector<2x128xf32>
    %184 = arith.subf %183, %171 : vector<2x128xf32>
    %185 = arith.mulf %180, %184 : vector<2x128xf32>
    %186 = tpu.reciprocal %182 {approx = true} : vector<2x128xf32> -> vector<2x128xf32>
    %187 = arith.mulf %185, %186 : vector<2x128xf32>
    %188 = arith.addf %171, %187 : vector<2x128xf32>
    %189 = vector.broadcast %181 : vector<1x1xf32> to vector<2x128xf32>
    %190 = arith.subf %189, %188 : vector<2x128xf32>
    %191 = vector.broadcast %181 : vector<1x1xf32> to vector<2x128xf32>
    %192 = arith.subf %191, %171 : vector<2x128xf32>
    %193 = arith.mulf %190, %192 : vector<2x128xf32>
    %194 = arith.mulf %193, %180 : vector<2x128xf32>
    %195 = arith.addf %178, %194 : vector<2x128xf32>
    %c0_46 = arith.constant 0 : index
    %c9 = arith.constant 9 : index
    %c0_47 = arith.constant 0 : index
    %c0_48 = arith.constant 0 : index
    %196 = vector.load %arg4[%c0_46, %c9, %c0_47, %c0_48] : memref<1x16x2x128xf32, #tpu.memory_space<vmem>>, vector<1x1x2x128xf32>
    %197 = vector.shape_cast %196 : vector<1x1x2x128xf32> to vector<2x128xf32>
    %198 = vector.extract_strided_slice %39 {offsets = [9, 0], sizes = [1, 1], strides = [1, 1]} : vector<16x1xf32> to vector<1x1xf32>
    %199 = arith.addf %182, %197 : vector<2x128xf32>
    %200 = vector.broadcast %198 : vector<1x1xf32> to vector<2x128xf32>
    %201 = arith.subf %200, %188 : vector<2x128xf32>
    %202 = arith.mulf %197, %201 : vector<2x128xf32>
    %203 = tpu.reciprocal %199 {approx = true} : vector<2x128xf32> -> vector<2x128xf32>
    %204 = arith.mulf %202, %203 : vector<2x128xf32>
    %205 = arith.addf %188, %204 : vector<2x128xf32>
    %206 = vector.broadcast %198 : vector<1x1xf32> to vector<2x128xf32>
    %207 = arith.subf %206, %205 : vector<2x128xf32>
    %208 = vector.broadcast %198 : vector<1x1xf32> to vector<2x128xf32>
    %209 = arith.subf %208, %188 : vector<2x128xf32>
    %210 = arith.mulf %207, %209 : vector<2x128xf32>
    %211 = arith.mulf %210, %197 : vector<2x128xf32>
    %212 = arith.addf %195, %211 : vector<2x128xf32>
    %c0_49 = arith.constant 0 : index
    %c10 = arith.constant 10 : index
    %c0_50 = arith.constant 0 : index
    %c0_51 = arith.constant 0 : index
    %213 = vector.load %arg4[%c0_49, %c10, %c0_50, %c0_51] : memref<1x16x2x128xf32, #tpu.memory_space<vmem>>, vector<1x1x2x128xf32>
    %214 = vector.shape_cast %213 : vector<1x1x2x128xf32> to vector<2x128xf32>
    %215 = vector.extract_strided_slice %39 {offsets = [10, 0], sizes = [1, 1], strides = [1, 1]} : vector<16x1xf32> to vector<1x1xf32>
    %216 = arith.addf %199, %214 : vector<2x128xf32>
    %217 = vector.broadcast %215 : vector<1x1xf32> to vector<2x128xf32>
    %218 = arith.subf %217, %205 : vector<2x128xf32>
    %219 = arith.mulf %214, %218 : vector<2x128xf32>
    %220 = tpu.reciprocal %216 {approx = true} : vector<2x128xf32> -> vector<2x128xf32>
    %221 = arith.mulf %219, %220 : vector<2x128xf32>
    %222 = arith.addf %205, %221 : vector<2x128xf32>
    %223 = vector.broadcast %215 : vector<1x1xf32> to vector<2x128xf32>
    %224 = arith.subf %223, %222 : vector<2x128xf32>
    %225 = vector.broadcast %215 : vector<1x1xf32> to vector<2x128xf32>
    %226 = arith.subf %225, %205 : vector<2x128xf32>
    %227 = arith.mulf %224, %226 : vector<2x128xf32>
    %228 = arith.mulf %227, %214 : vector<2x128xf32>
    %229 = arith.addf %212, %228 : vector<2x128xf32>
    %c0_52 = arith.constant 0 : index
    %c11 = arith.constant 11 : index
    %c0_53 = arith.constant 0 : index
    %c0_54 = arith.constant 0 : index
    %230 = vector.load %arg4[%c0_52, %c11, %c0_53, %c0_54] : memref<1x16x2x128xf32, #tpu.memory_space<vmem>>, vector<1x1x2x128xf32>
    %231 = vector.shape_cast %230 : vector<1x1x2x128xf32> to vector<2x128xf32>
    %232 = vector.extract_strided_slice %39 {offsets = [11, 0], sizes = [1, 1], strides = [1, 1]} : vector<16x1xf32> to vector<1x1xf32>
    %233 = arith.addf %216, %231 : vector<2x128xf32>
    %234 = vector.broadcast %232 : vector<1x1xf32> to vector<2x128xf32>
    %235 = arith.subf %234, %222 : vector<2x128xf32>
    %236 = arith.mulf %231, %235 : vector<2x128xf32>
    %237 = tpu.reciprocal %233 {approx = true} : vector<2x128xf32> -> vector<2x128xf32>
    %238 = arith.mulf %236, %237 : vector<2x128xf32>
    %239 = arith.addf %222, %238 : vector<2x128xf32>
    %240 = vector.broadcast %232 : vector<1x1xf32> to vector<2x128xf32>
    %241 = arith.subf %240, %239 : vector<2x128xf32>
    %242 = vector.broadcast %232 : vector<1x1xf32> to vector<2x128xf32>
    %243 = arith.subf %242, %222 : vector<2x128xf32>
    %244 = arith.mulf %241, %243 : vector<2x128xf32>
    %245 = arith.mulf %244, %231 : vector<2x128xf32>
    %246 = arith.addf %229, %245 : vector<2x128xf32>
    %c0_55 = arith.constant 0 : index
    %c12 = arith.constant 12 : index
    %c0_56 = arith.constant 0 : index
    %c0_57 = arith.constant 0 : index
    %247 = vector.load %arg4[%c0_55, %c12, %c0_56, %c0_57] : memref<1x16x2x128xf32, #tpu.memory_space<vmem>>, vector<1x1x2x128xf32>
    %248 = vector.shape_cast %247 : vector<1x1x2x128xf32> to vector<2x128xf32>
    %249 = vector.extract_strided_slice %39 {offsets = [12, 0], sizes = [1, 1], strides = [1, 1]} : vector<16x1xf32> to vector<1x1xf32>
    %250 = arith.addf %233, %248 : vector<2x128xf32>
    %251 = vector.broadcast %249 : vector<1x1xf32> to vector<2x128xf32>
    %252 = arith.subf %251, %239 : vector<2x128xf32>
    %253 = arith.mulf %248, %252 : vector<2x128xf32>
    %254 = tpu.reciprocal %250 {approx = true} : vector<2x128xf32> -> vector<2x128xf32>
    %255 = arith.mulf %253, %254 : vector<2x128xf32>
    %256 = arith.addf %239, %255 : vector<2x128xf32>
    %257 = vector.broadcast %249 : vector<1x1xf32> to vector<2x128xf32>
    %258 = arith.subf %257, %256 : vector<2x128xf32>
    %259 = vector.broadcast %249 : vector<1x1xf32> to vector<2x128xf32>
    %260 = arith.subf %259, %239 : vector<2x128xf32>
    %261 = arith.mulf %258, %260 : vector<2x128xf32>
    %262 = arith.mulf %261, %248 : vector<2x128xf32>
    %263 = arith.addf %246, %262 : vector<2x128xf32>
    %c0_58 = arith.constant 0 : index
    %c13 = arith.constant 13 : index
    %c0_59 = arith.constant 0 : index
    %c0_60 = arith.constant 0 : index
    %264 = vector.load %arg4[%c0_58, %c13, %c0_59, %c0_60] : memref<1x16x2x128xf32, #tpu.memory_space<vmem>>, vector<1x1x2x128xf32>
    %265 = vector.shape_cast %264 : vector<1x1x2x128xf32> to vector<2x128xf32>
    %266 = vector.extract_strided_slice %39 {offsets = [13, 0], sizes = [1, 1], strides = [1, 1]} : vector<16x1xf32> to vector<1x1xf32>
    %267 = arith.addf %250, %265 : vector<2x128xf32>
    %268 = vector.broadcast %266 : vector<1x1xf32> to vector<2x128xf32>
    %269 = arith.subf %268, %256 : vector<2x128xf32>
    %270 = arith.mulf %265, %269 : vector<2x128xf32>
    %271 = tpu.reciprocal %267 {approx = true} : vector<2x128xf32> -> vector<2x128xf32>
    %272 = arith.mulf %270, %271 : vector<2x128xf32>
    %273 = arith.addf %256, %272 : vector<2x128xf32>
    %274 = vector.broadcast %266 : vector<1x1xf32> to vector<2x128xf32>
    %275 = arith.subf %274, %273 : vector<2x128xf32>
    %276 = vector.broadcast %266 : vector<1x1xf32> to vector<2x128xf32>
    %277 = arith.subf %276, %256 : vector<2x128xf32>
    %278 = arith.mulf %275, %277 : vector<2x128xf32>
    %279 = arith.mulf %278, %265 : vector<2x128xf32>
    %280 = arith.addf %263, %279 : vector<2x128xf32>
    %c0_61 = arith.constant 0 : index
    %c14 = arith.constant 14 : index
    %c0_62 = arith.constant 0 : index
    %c0_63 = arith.constant 0 : index
    %281 = vector.load %arg4[%c0_61, %c14, %c0_62, %c0_63] : memref<1x16x2x128xf32, #tpu.memory_space<vmem>>, vector<1x1x2x128xf32>
    %282 = vector.shape_cast %281 : vector<1x1x2x128xf32> to vector<2x128xf32>
    %283 = vector.extract_strided_slice %39 {offsets = [14, 0], sizes = [1, 1], strides = [1, 1]} : vector<16x1xf32> to vector<1x1xf32>
    %284 = arith.addf %267, %282 : vector<2x128xf32>
    %285 = vector.broadcast %283 : vector<1x1xf32> to vector<2x128xf32>
    %286 = arith.subf %285, %273 : vector<2x128xf32>
    %287 = arith.mulf %282, %286 : vector<2x128xf32>
    %288 = tpu.reciprocal %284 {approx = true} : vector<2x128xf32> -> vector<2x128xf32>
    %289 = arith.mulf %287, %288 : vector<2x128xf32>
    %290 = arith.addf %273, %289 : vector<2x128xf32>
    %291 = vector.broadcast %283 : vector<1x1xf32> to vector<2x128xf32>
    %292 = arith.subf %291, %290 : vector<2x128xf32>
    %293 = vector.broadcast %283 : vector<1x1xf32> to vector<2x128xf32>
    %294 = arith.subf %293, %273 : vector<2x128xf32>
    %295 = arith.mulf %292, %294 : vector<2x128xf32>
    %296 = arith.mulf %295, %282 : vector<2x128xf32>
    %297 = arith.addf %280, %296 : vector<2x128xf32>
    %c0_64 = arith.constant 0 : index
    %c15 = arith.constant 15 : index
    %c0_65 = arith.constant 0 : index
    %c0_66 = arith.constant 0 : index
    %298 = vector.load %arg4[%c0_64, %c15, %c0_65, %c0_66] : memref<1x16x2x128xf32, #tpu.memory_space<vmem>>, vector<1x1x2x128xf32>
    %299 = vector.shape_cast %298 : vector<1x1x2x128xf32> to vector<2x128xf32>
    %300 = vector.extract_strided_slice %39 {offsets = [15, 0], sizes = [1, 1], strides = [1, 1]} : vector<16x1xf32> to vector<1x1xf32>
    %301 = arith.addf %284, %299 : vector<2x128xf32>
    %302 = vector.broadcast %300 : vector<1x1xf32> to vector<2x128xf32>
    %303 = arith.subf %302, %290 : vector<2x128xf32>
    %304 = arith.mulf %299, %303 : vector<2x128xf32>
    %305 = tpu.reciprocal %301 {approx = true} : vector<2x128xf32> -> vector<2x128xf32>
    %306 = arith.mulf %304, %305 : vector<2x128xf32>
    %307 = arith.addf %290, %306 : vector<2x128xf32>
    %308 = vector.broadcast %300 : vector<1x1xf32> to vector<2x128xf32>
    %309 = arith.subf %308, %307 : vector<2x128xf32>
    %310 = vector.broadcast %300 : vector<1x1xf32> to vector<2x128xf32>
    %311 = arith.subf %310, %290 : vector<2x128xf32>
    %312 = arith.mulf %309, %311 : vector<2x128xf32>
    %313 = arith.mulf %312, %299 : vector<2x128xf32>
    %314 = arith.addf %297, %313 : vector<2x128xf32>
    %c0_67 = arith.constant 0 : index
    %c0_68 = arith.constant 0 : index
    %315 = vector.load %arg5[%c0_67, %c0_68] : memref<2x128xf32, #tpu.memory_space<vmem>>, vector<2x128xf32>
    tpu.vector_store %arg5[%c0_67, %c0_68], %307 {strides = array<i32>} : memref<2x128xf32, #tpu.memory_space<vmem>>, vector<2x128xf32>,
    %c0_69 = arith.constant 0 : index
    %c0_70 = arith.constant 0 : index
    %316 = vector.load %arg6[%c0_69, %c0_70] : memref<2x128xf32, #tpu.memory_space<vmem>>, vector<2x128xf32>
    tpu.vector_store %arg6[%c0_69, %c0_70], %314 {strides = array<i32>} : memref<2x128xf32, #tpu.memory_space<vmem>>, vector<2x128xf32>,
    %c0_71 = arith.constant 0 : index
    %c0_72 = arith.constant 0 : index
    %317 = vector.load %arg7[%c0_71, %c0_72] : memref<2x128xf32, #tpu.memory_space<vmem>>, vector<2x128xf32>
    tpu.vector_store %arg7[%c0_71, %c0_72], %301 {strides = array<i32>} : memref<2x128xf32, #tpu.memory_space<vmem>>, vector<2x128xf32>,
    return
  }
  func.func @transform_0(%arg0: i32) -> (i32, i32) {
    %c0_i32 = arith.constant 0 : i32
    %c0_i32_0 = arith.constant 0 : i32
    %c0_i32_1 = arith.constant 0 : i32
    return %c0_i32, %c0_i32_0 : i32, i32
  }
  func.func @transform_1(%arg0: i32) -> (i32, i32) {
    %c0_i32 = arith.constant 0 : i32
    %c0_i32_0 = arith.constant 0 : i32
    %c0_i32_1 = arith.constant 0 : i32
    return %c0_i32, %c0_i32_0 : i32, i32
  }
  func.func @transform_2(%arg0: i32) -> (i32, i32, i32) {
    %c0_i32 = arith.constant 0 : i32
    %c0_i32_0 = arith.constant 0 : i32
    %c0_i32_1 = arith.constant 0 : i32
    return %arg0, %c0_i32, %c0_i32_0 : i32, i32, i32
  }
  func.func @transform_3(%arg0: i32) -> (i32, i32, i32, i32) {
    %c0_i32 = arith.constant 0 : i32
    %c0_i32_0 = arith.constant 0 : i32
    %c0_i32_1 = arith.constant 0 : i32
    %c0_i32_2 = arith.constant 0 : i32
    return %arg0, %c0_i32, %c0_i32_0, %c0_i32_1 : i32, i32, i32, i32
  }
  func.func @transform_4(%arg0: i32) -> (i32, i32) {
    %c0_i32 = arith.constant 0 : i32
    %c0_i32_0 = arith.constant 0 : i32
    %c0_i32_1 = arith.constant 0 : i32
    return %c0_i32, %c0_i32_0 : i32, i32
  }
  func.func @transform_5(%arg0: i32) -> (i32, i32) {
    %c0_i32 = arith.constant 0 : i32
    %c0_i32_0 = arith.constant 0 : i32
    %c0_i32_1 = arith.constant 0 : i32
    return %c0_i32, %c0_i32_0 : i32, i32
  }
  func.func @transform_6(%arg0: i32) -> (i32, i32) {
    %c0_i32 = arith.constant 0 : i32
    %c0_i32_0 = arith.constant 0 : i32
    %c0_i32_1 = arith.constant 0 : i32
    return %c0_i32, %c0_i32_0 : i32, i32
  }
}

</mosaic_0001>

<llo_original>
// kernel: tpu_custom_call.1
$region0: #{tpu_custom_call.1}
  #allocation0 [shape = 'u32[]', space=smem, size = 0x4, offset = 0x4, fixed_abs, tag = 'smem constant byte address 0x4 - core index']
  #allocation1 [shape = 'u32[72,128]{1,0:T(1,128)}', space=vmem, size = 0x9000, scoped, tag = 'internal scratch']
  %s0 = inlined_call_operand.vmem [shape: f32[3,256], index: 0, kind: input, shape index: {}]
  %s1 = inlined_call_operand.vmem [shape: bf16[768,32], index: 1, kind: input, shape index: {}]
  %s2 = inlined_call_operand.vmem [shape: f32[2,17,256], index: 2, kind: input, shape index: {}]
  %s3 = inlined_call_operand.vmem [shape: f32[2,16,2,128], index: 3, kind: input, shape index: {}]
  %s4 = inlined_call_operand.hbm [shape: f32[2,128], index: 4, kind: output, shape index: {0}]
  %s5 = inlined_call_operand.hbm [shape: f32[2,128], index: 5, kind: output, shape index: {1}]
  %s6 = inlined_call_operand.hbm [shape: f32[2,128], index: 6, kind: output, shape index: {2}]
  %7 = xla_tuple %s4, %s5, %s6
  %s8 = sld [smem:[#allocation0]]
  $region69: #{tpu_custom_call.1} parent=0
    _
  %s10 = ssub.s32 1, %s8
  %s11 = scalar_select 0, %s10, %s8
  $region1: #{tpu_custom_call.1} parent=0
    #allocation2 [shape = 'u8[1024]{0}', space=vmem, size = 0x400, scoped, tag = 'output window, operand 0, single buffered']
    #allocation3 [shape = 's32[2]{0}', space=sflag, size = 0x8, scoped, tag = 'scoped memory for tpu_custom_call.1']
    #allocation4 [shape = 'u8[1024]{0}', space=vmem, size = 0x400, scoped, tag = 'output window, operand 1, single buffered']
    #allocation5 [shape = 's32[1]{0}', space=sflag, size = 0x4, scoped, tag = 'scoped memory for tpu_custom_call.1']
    #allocation6 [shape = 'u8[1024]{0}', space=vmem, size = 0x400, scoped, tag = 'output window, operand 2, single buffered']
    %12 = vsyncpa [#allocation3], 0
    %13 = vsyncpa [#allocation5], 0
    loop: start=0, step=1, limit=4
    $region2: #{tpu_custom_call.1} parent=1 // loop_pre_header
      _
    $region3: #{tpu_custom_call.1} parent=1 // loop_header
      %s15 = sphi 0, %s19
      %p16 = scmp.ge.s32.totalorder %s15, 4
      %s23 = sphi 0, %s23
      %s25 = sphi 0, %s23
      %s26 = sphi 0, %s25
      %s40 = sphi 0, %s26
      %s44 = sphi 0, %s44
      %s46 = sphi 0, %s44
      %s47 = sphi 0, %s46
      %s61 = sphi 0, %s47
      %s67 = sphi 0, %s69
      %s70 = sphi 0, %s67
      %s71 = sphi 0, %s70
      %s87 = sphi 0, %s71
      %s93 = sphi 0, %s95
      %s96 = sphi 0, %s93
      %s97 = sphi 0, %s96
      %s113 = sphi 0, %s97
      %s117 = sphi 0, %s117
      %s119 = sphi 0, %s117
      %s120 = sphi 0, %s119
      %s134 = sphi 0, %s120
      %s138 = sphi 0, %s138
      %s140 = sphi 0, %s138
      %s141 = sphi 0, %s140
      %s155 = sphi 0, %s141
      %s159 = sphi 0, %s159
      %s161 = sphi 0, %s159
      %s162 = sphi 0, %s161
      %s176 = sphi 0, %s162
    $region4: #{tpu_custom_call.1} parent=1 // loop_header_branch
      %18 = sbr.rel (%p16) target = $region8
    $region5: #{tpu_custom_call.1} parent=1 // loop_body
      %s20 = ssub.s32 %s15, 1
      %s21 = ssub.s32 %s15, 2
      %s22 = sadd.s32 %s15, 1
      %s24 = sadd.s32 %s23, 1
      %p27 = scmp.eq.s32.totalorder %s15, 1
      %p28 = scmp.ne.s32.totalorder %s23, %s25
      %p29 = scmp.eq.s32.totalorder %s15, 0
      %p30 = por %p28, %p29
      %p31 = scmp.ne.s32.totalorder %s23, %s25
      %p32 = scmp.eq.s32.totalorder %s20, 1
      %p33 = por %p31, %p32
      %p34 = scmp.ne.s32.totalorder %s25, %s26
      %p35 = scmp.eq.s32.totalorder %s20, 0
      %p36 = por %p34, %p35
      %p37 = scmp.ne.s32.totalorder %s25, %s26
      %p38 = scmp.eq.s32.totalorder %s21, 1
      %p39 = por %p37, %p38
      %p41 = scmp.ne.s32.totalorder %s26, %s40
      %p42 = scmp.eq.s32.totalorder %s21, 0
      %p43 = por %p41, %p42
      %s45 = sadd.s32 %s44, 1
      %p48 = scmp.eq.s32.totalorder %s15, 1
      %p49 = scmp.ne.s32.totalorder %s44, %s46
      %p50 = scmp.eq.s32.totalorder %s15, 0
      %p51 = por %p49, %p50
      %p52 = scmp.ne.s32.totalorder %s44, %s46
      %p53 = scmp.eq.s32.totalorder %s20, 1
      %p54 = por %p52, %p53
      %p55 = scmp.ne.s32.totalorder %s46, %s47
      %p56 = scmp.eq.s32.totalorder %s20, 0
      %p57 = por %p55, %p56
      %p58 = scmp.ne.s32.totalorder %s46, %s47
      %p59 = scmp.eq.s32.totalorder %s21, 1
      %p60 = por %p58, %p59
      %p62 = scmp.ne.s32.totalorder %s47, %s61
      %p63 = scmp.eq.s32.totalorder %s21, 0
      %p64 = por %p62, %p63
      %s65 = ssub.s32 %s15, %s22
      %p66 = scmp.eq.s32.totalorder %s65, 0
      %s68 = sadd.s32 %s67, 1
      %s69 = scalar_select %p66, %s67, %s68
      %p72 = pneg %p66
      %p73 = scmp.eq.s32.totalorder %s15, 1
      %p74 = por %p72, %p73
      %p75 = scmp.ne.s32.totalorder %s67, %s70
      %p76 = scmp.eq.s32.totalorder %s15, 0
      %p77 = por %p75, %p76
      %p78 = scmp.ne.s32.totalorder %s67, %s70
      %p79 = scmp.eq.s32.totalorder %s20, 1
      %p80 = por %p78, %p79
      %p81 = scmp.ne.s32.totalorder %s70, %s71
      %p82 = scmp.eq.s32.totalorder %s20, 0
      %p83 = por %p81, %p82
      %p84 = scmp.ne.s32.totalorder %s70, %s71
      %p85 = scmp.eq.s32.totalorder %s21, 1
      %p86 = por %p84, %p85
      %p88 = scmp.ne.s32.totalorder %s71, %s87
      %p89 = scmp.eq.s32.totalorder %s21, 0
      %p90 = por %p88, %p89
      %s91 = ssub.s32 %s15, %s22
      %p92 = scmp.eq.s32.totalorder %s91, 0
      %s94 = sadd.s32 %s93, 1
      %s95 = scalar_select %p92, %s93, %s94
      %p98 = pneg %p92
      %p99 = scmp.eq.s32.totalorder %s15, 1
      %p100 = por %p98, %p99
      %p101 = scmp.ne.s32.totalorder %s93, %s96
      %p102 = scmp.eq.s32.totalorder %s15, 0
      %p103 = por %p101, %p102
      %p104 = scmp.ne.s32.totalorder %s93, %s96
      %p105 = scmp.eq.s32.totalorder %s20, 1
      %p106 = por %p104, %p105
      %p107 = scmp.ne.s32.totalorder %s96, %s97
      %p108 = scmp.eq.s32.totalorder %s20, 0
      %p109 = por %p107, %p108
      %p110 = scmp.ne.s32.totalorder %s96, %s97
      %p111 = scmp.eq.s32.totalorder %s21, 1
      %p112 = por %p110, %p111
      %p114 = scmp.ne.s32.totalorder %s97, %s113
      %p115 = scmp.eq.s32.totalorder %s21, 0
      %p116 = por %p114, %p115
      %s118 = sadd.s32 %s117, 1
      %p121 = scmp.eq.s32.totalorder %s15, 1
      %p122 = scmp.ne.s32.totalorder %s117, %s119
      %p123 = scmp.eq.s32.totalorder %s15, 0
      %p124 = por %p122, %p123
      %p125 = scmp.ne.s32.totalorder %s117, %s119
      %p126 = scmp.eq.s32.totalorder %s20, 1
      %p127 = por %p125, %p126
      %p128 = scmp.ne.s32.totalorder %s119, %s120
      %p129 = scmp.eq.s32.totalorder %s20, 0
      %p130 = por %p128, %p129
      %p131 = scmp.ne.s32.totalorder %s119, %s120
      %p132 = scmp.eq.s32.totalorder %s21, 1
      %p133 = por %p131, %p132
      %p135 = scmp.ne.s32.totalorder %s120, %s134
      %p136 = scmp.eq.s32.totalorder %s21, 0
      %p137 = por %p135, %p136
      %s139 = sadd.s32 %s138, 1
      %p142 = scmp.eq.s32.totalorder %s15, 1
      %p143 = scmp.ne.s32.totalorder %s138, %s140
      %p144 = scmp.eq.s32.totalorder %s15, 0
      %p145 = por %p143, %p144
      %p146 = scmp.ne.s32.totalorder %s138, %s140
      %p147 = scmp.eq.s32.totalorder %s20, 1
      %p148 = por %p146, %p147
      %p149 = scmp.ne.s32.totalorder %s140, %s141
      %p150 = scmp.eq.s32.totalorder %s20, 0
      %p151 = por %p149, %p150
      %p152 = scmp.ne.s32.totalorder %s140, %s141
      %p153 = scmp.eq.s32.totalorder %s21, 1
      %p154 = por %p152, %p153
      %p156 = scmp.ne.s32.totalorder %s141, %s155
      %p157 = scmp.eq.s32.totalorder %s21, 0
      %p158 = por %p156, %p157
      %s160 = sadd.s32 %s159, 1
      %p163 = scmp.eq.s32.totalorder %s15, 1
      %p164 = scmp.ne.s32.totalorder %s159, %s161
      %p165 = scmp.eq.s32.totalorder %s15, 0
      %p166 = por %p164, %p165
      %p167 = scmp.ne.s32.totalorder %s159, %s161
      %p168 = scmp.eq.s32.totalorder %s20, 1
      %p169 = por %p167, %p168
      %p170 = scmp.ne.s32.totalorder %s161, %s162
      %p171 = scmp.eq.s32.totalorder %s20, 0
      %p172 = por %p170, %p171
      %p173 = scmp.ne.s32.totalorder %s161, %s162
      %p174 = scmp.eq.s32.totalorder %s21, 1
      %p175 = por %p173, %p174
      %p177 = scmp.ne.s32.totalorder %s162, %s176
      %p178 = scmp.eq.s32.totalorder %s21, 0
      %p179 = por %p177, %p178
      %p180 = scmp.le.s32.totalorder 1, %s15
      %p181 = scmp.lt.s32.totalorder %s15, 3
      %p182 = pnand %p180, %p181
      %p183 = pneg %p182
      // Predicated region
      $region9: #{tpu_custom_call.1} parent=5 // pred_check
        _
      $region10: #{tpu_custom_call.1} parent=5 // pred_check_branch
        %185 = sbr.rel (%p182) target = $region12
      $region11: #{tpu_custom_call.1} parent=5 // pred_region
        %s186 = ssub.s32 %s15, 1
        // Predicated region
        $region13: #{tpu_custom_call.1} parent=11 // pred_check
          %p187 = pneg %p36
        $region14: #{tpu_custom_call.1} parent=11 // pred_check_branch
          %189 = sbr.rel (%p187) target = $region16
        $region15: #{tpu_custom_call.1} parent=11 // pred_region
          _
        $region16: #{tpu_custom_call.1} parent=11 // pred_fallthru
          _
        // Predicated region
        $region17: #{tpu_custom_call.1} parent=11 // pred_check
          %p190 = pneg %p57
        $region18: #{tpu_custom_call.1} parent=11 // pred_check_branch
          %192 = sbr.rel (%p190) target = $region20
        $region19: #{tpu_custom_call.1} parent=11 // pred_region
          _
        $region20: #{tpu_custom_call.1} parent=11 // pred_fallthru
          _
      $region12: #{tpu_custom_call.1} parent=5 // pred_fallthru
        _
      %p193 = scmp.lt.s32.totalorder %s15, 2
      // Predicated region
      $region21: #{tpu_custom_call.1} parent=5 // pred_check
        %p194 = pneg %p193
      $region22: #{tpu_custom_call.1} parent=5 // pred_check_branch
        %196 = sbr.rel (%p194) target = $region24
      $region23: #{tpu_custom_call.1} parent=5 // pred_region
        // Predicated region
        $region25: #{tpu_custom_call.1} parent=23 // pred_check
          %p197 = pneg %p77
        $region26: #{tpu_custom_call.1} parent=23 // pred_check_branch
          %199 = sbr.rel (%p197) target = $region28
        $region27: #{tpu_custom_call.1} parent=23 // pred_region
          %p200 = scmp.lt.s32.totalorder %s15, 1
          %s201 = scalar_select %p200, %s15, 1
          %s202 = smul.addr %s201, 6
          %s203 = smul.addr %s202, 8
          %s204 = scalar_lea.vmem %s2, %s203
        $region28: #{tpu_custom_call.1} parent=23 // pred_fallthru
          _
        // Predicated region
        $region29: #{tpu_custom_call.1} parent=23 // pred_check
          %p205 = pneg %p103
        $region30: #{tpu_custom_call.1} parent=23 // pred_check_branch
          %207 = sbr.rel (%p205) target = $region32
        $region31: #{tpu_custom_call.1} parent=23 // pred_region
          %p208 = scmp.lt.s32.totalorder %s15, 1
          %s209 = scalar_select %p208, %s15, 1
          %s210 = smul.addr %s209, 16
          %s211 = smul.addr %s210, 2
          %s212 = scalar_lea.vmem %s3, %s211
        $region32: #{tpu_custom_call.1} parent=23 // pred_fallthru
          _
      $region24: #{tpu_custom_call.1} parent=5 // pred_fallthru
        _
      %p213 = scmp.le.s32.totalorder 1, %s15
      %p214 = scmp.lt.s32.totalorder %s15, 3
      %p215 = pnand %p213, %p214
      %p216 = pneg %p215
      // Predicated region
      $region33: #{tpu_custom_call.1} parent=5 // pred_check
        _
      $region34: #{tpu_custom_call.1} parent=5 // pred_check_branch
        %218 = sbr.rel (%p215) target = $region36
      $region35: #{tpu_custom_call.1} parent=5 // pred_region
        %s219 = ssub.s32 %s15, 1
        %p220 = pneg %p36
        %p221 = pneg %p33
        %p222 = pneg %p57
        %p223 = pneg %p54
        %p224 = scmp.lt.s32.totalorder %s20, 1
        %s225 = scalar_select %p224, %s20, 1
        %s226 = smul.addr %s225, 6
        %s227 = smul.addr %s226, 8
        %s228 = scalar_lea.vmem %s2, %s227
        %p229 = pneg %p83
        %p230 = pneg %p80
        %p231 = scmp.lt.s32.totalorder %s20, 1
        %s232 = scalar_select %p231, %s20, 1
        %s233 = smul.addr %s232, 16
        %s234 = smul.addr %s233, 2
        %s235 = scalar_lea.vmem %s3, %s234
        %p236 = pneg %p109
        %p237 = pneg %p106
        %p238 = pneg %p130
        %p239 = pneg %p127
        %p240 = pneg %p151
        %p241 = pneg %p148
        %p242 = pneg %p172
        %p243 = pneg %p169
        %p244 = scmp.lt.s32.totalorder %s20, 1
        %s245 = scalar_select %p244, %s20, 1
        %s246 = smul.addr %s245, 6
        %s247 = smul.addr %s246, 8
        %s248 = scalar_lea.vmem %s2, %s247
        %p249 = scmp.lt.s32.totalorder %s20, 1
        %s250 = scalar_select %p249, %s20, 1
        %s251 = smul.addr %s250, 16
        %s252 = smul.addr %s251, 2
        %s253 = scalar_lea.vmem %s3, %s252
        %p254 = scmp.eq.s32.totalorder %s20, 0
        // Predicated region
        $region37: #{tpu_custom_call.1} parent=35 // pred_check
          %p255 = pneg %p254
        $region38: #{tpu_custom_call.1} parent=35 // pred_check_branch
          %257 = sbr.rel (%p255) target = $region40
        $region39: #{tpu_custom_call.1} parent=35 // pred_region
          %258 = vst [vmem:[#allocation2] sm:$0x3] 0.0
          %259 = vst [vmem:[#allocation4] sm:$0x3] 0.0
          %260 = vst [vmem:[#allocation6] sm:$0x3] 1e-10
        $region40: #{tpu_custom_call.1} parent=35 // pred_fallthru
          _
        %v261 = vld [vmem:[%s0] sm:$0x77]
        %v262 = vld [vmem:[%s248] sm:$0xff]
        %v263 = vld [vmem:[%s248 + $0x8] sm:$0xff]
        %v264 = vld [vmem:[%s248 + $0x10] sm:$0xff]
        %v265 = vld [vmem:[%s248 + $0x18] sm:$0xff]
        %v266 = vld [vmem:[%s248 + $0x20] sm:$0x1]
        %v267 = vld [vmem:[%s248 + $0x28] sm:$0x1]
        %v269 = vperm.slane %v261, 0
        %v270 = vperm.slane %v261, 4
        %v273 = vperm.slane %v269, 0
        %v274 = vperm.slane %v270, 0
        %v275 = vmul.f32 %v262, %v273
        %v276 = vmul.f32 %v263, %v274
        %v277 = vmul.f32 %v264, %v273
        %v278 = vmul.f32 %v265, %v274
        %v279 = vmul.f32 %v266, %v273
        %v280 = vmul.f32 %v267, %v274
        %v281 = vperm.slane %v261, 1
        %v282 = vperm.slane %v261, 5
        %v285 = vperm.slane %v281, 1
        %v286 = vperm.slane %v282, 1
        %v287 = vmul.f32 %v262, %v285
        %v288 = vmul.f32 %v263, %v286
        %v289 = vmul.f32 %v264, %v285
        %v290 = vmul.f32 %v265, %v286
        %v291 = vmul.f32 %v266, %v285
        %v292 = vmul.f32 %v267, %v286
        %v293 = vperm.slane %v261, 2
        %v294 = vperm.slane %v261, 6
        %v297 = vperm.slane %v293, 2
        %v298 = vperm.slane %v294, 2
        %v299 = vmul.f32 %v262, %v297
        %v300 = vmul.f32 %v263, %v298
        %v301 = vmul.f32 %v264, %v297
        %v302 = vmul.f32 %v265, %v298
        %v303 = vmul.f32 %v266, %v297
        %v304 = vmul.f32 %v267, %v298
        %v305 = vpack.c.bf16 %v277, %v275
        %v306 = vpack.c.bf16 %v278, %v276
        %v307 = vpack.c.bf16 %v289, %v287
        %v308 = vpack.c.bf16 %v290, %v288
        %v309 = vpack.c.bf16 %v301, %v299
        %v310 = vpack.c.bf16 %v302, %v300
        %v311 = vpack.c.bf16 %v279, %v279
        %v312 = vpack.c.bf16 %v280, %v280
        %v313 = vpack.c.bf16 %v291, %v291
        %v314 = vpack.c.bf16 %v292, %v292
        %v315 = vpack.c.bf16 %v303, %v303
        %v316 = vpack.c.bf16 %v304, %v304
        %v317 = vld [vmem:[%s1] sm:$0xf]
        %v318 = vld [vmem:[%s1 + $0x4] sm:$0xf]
        %v319 = vld [vmem:[%s1 + $0x8] sm:$0xf]
        %v320 = vld [vmem:[%s1 + $0xc] sm:$0xf]
        %v321 = vld [vmem:[%s1 + $0x10] sm:$0xf]
        %v322 = vld [vmem:[%s1 + $0x14] sm:$0xf]
        %v323 = vld [vmem:[%s1 + $0x18] sm:$0xf]
        %v324 = vld [vmem:[%s1 + $0x1c] sm:$0xf]
        %v325 = vld [vmem:[%s1 + $0x20] sm:$0xf]
        %v326 = vld [vmem:[%s1 + $0x24] sm:$0xf]
        %v327 = vld [vmem:[%s1 + $0x28] sm:$0xf]
        %v328 = vld [vmem:[%s1 + $0x2c] sm:$0xf]
        %v329 = vld [vmem:[%s1 + $0x30] sm:$0xf]
        %v330 = vld [vmem:[%s1 + $0x34] sm:$0xf]
        %v331 = vld [vmem:[%s1 + $0x38] sm:$0xf]
        %v332 = vld [vmem:[%s1 + $0x3c] sm:$0xf]
        %v333 = vld [vmem:[%s1 + $0x40] sm:$0xf]
        %v334 = vld [vmem:[%s1 + $0x44] sm:$0xf]
        %v335 = vld [vmem:[%s1 + $0x48] sm:$0xf]
        %v336 = vld [vmem:[%s1 + $0x4c] sm:$0xf]
        %v337 = vld [vmem:[%s1 + $0x50] sm:$0xf]
        %v338 = vld [vmem:[%s1 + $0x54] sm:$0xf]
        %v339 = vld [vmem:[%s1 + $0x58] sm:$0xf]
        %v340 = vld [vmem:[%s1 + $0x5c] sm:$0xf]
        %v341 = vld [vmem:[%s1 + $0x60] sm:$0xf]
        %v342 = vld [vmem:[%s1 + $0x64] sm:$0xf]
        %v343 = vld [vmem:[%s1 + $0x68] sm:$0xf]
        %v344 = vld [vmem:[%s1 + $0x6c] sm:$0xf]
        %v345 = vld [vmem:[%s1 + $0x70] sm:$0xf]
        %v346 = vld [vmem:[%s1 + $0x74] sm:$0xf]
        %v347 = vld [vmem:[%s1 + $0x78] sm:$0xf]
        %v348 = vld [vmem:[%s1 + $0x7c] sm:$0xf]
        %v349 = vld [vmem:[%s1 + $0x80] sm:$0xf]
        %v350 = vld [vmem:[%s1 + $0x84] sm:$0xf]
        %v351 = vld [vmem:[%s1 + $0x88] sm:$0xf]
        %v352 = vld [vmem:[%s1 + $0x8c] sm:$0xf]
        %v353 = vld [vmem:[%s1 + $0x90] sm:$0xf]
        %v354 = vld [vmem:[%s1 + $0x94] sm:$0xf]
        %v355 = vld [vmem:[%s1 + $0x98] sm:$0xf]
        %v356 = vld [vmem:[%s1 + $0x9c] sm:$0xf]
        %v357 = vld [vmem:[%s1 + $0xa0] sm:$0xf]
        %v358 = vld [vmem:[%s1 + $0xa4] sm:$0xf]
        %v359 = vld [vmem:[%s1 + $0xa8] sm:$0xf]
        %v360 = vld [vmem:[%s1 + $0xac] sm:$0xf]
        %v361 = vld [vmem:[%s1 + $0xb0] sm:$0xf]
        %v362 = vld [vmem:[%s1 + $0xb4] sm:$0xf]
        %v363 = vld [vmem:[%s1 + $0xb8] sm:$0xf]
        %v364 = vld [vmem:[%s1 + $0xbc] sm:$0xf]
        %v365 = vld [vmem:[%s1 + $0xc0] sm:$0xf]
        %v366 = vld [vmem:[%s1 + $0xc4] sm:$0xf]
        %v367 = vld [vmem:[%s1 + $0xc8] sm:$0xf]
        %v368 = vld [vmem:[%s1 + $0xcc] sm:$0xf]
        %v369 = vld [vmem:[%s1 + $0xd0] sm:$0xf]
        %v370 = vld [vmem:[%s1 + $0xd4] sm:$0xf]
        %v371 = vld [vmem:[%s1 + $0xd8] sm:$0xf]
        %v372 = vld [vmem:[%s1 + $0xdc] sm:$0xf]
        %v373 = vld [vmem:[%s1 + $0xe0] sm:$0xf]
        %v374 = vld [vmem:[%s1 + $0xe4] sm:$0xf]
        %v375 = vld [vmem:[%s1 + $0xe8] sm:$0xf]
        %v376 = vld [vmem:[%s1 + $0xec] sm:$0xf]
        %v377 = vld [vmem:[%s1 + $0xf0] sm:$0xf]
        %v378 = vld [vmem:[%s1 + $0xf4] sm:$0xf]
        %v379 = vld [vmem:[%s1 + $0xf8] sm:$0xf]
        %v380 = vld [vmem:[%s1 + $0xfc] sm:$0xf]
        %v381 = vld [vmem:[%s1 + $0x100] sm:$0xf]
        %v382 = vld [vmem:[%s1 + $0x104] sm:$0xf]
        %v383 = vld [vmem:[%s1 + $0x108] sm:$0xf]
        %v384 = vld [vmem:[%s1 + $0x10c] sm:$0xf]
        %v385 = vld [vmem:[%s1 + $0x110] sm:$0xf]
        %v386 = vld [vmem:[%s1 + $0x114] sm:$0xf]
        %v387 = vld [vmem:[%s1 + $0x118] sm:$0xf]
        %v388 = vld [vmem:[%s1 + $0x11c] sm:$0xf]
        %v389 = vld [vmem:[%s1 + $0x120] sm:$0xf]
        %v390 = vld [vmem:[%s1 + $0x124] sm:$0xf]
        %v391 = vld [vmem:[%s1 + $0x128] sm:$0xf]
        %v392 = vld [vmem:[%s1 + $0x12c] sm:$0xf]
        %v393 = vld [vmem:[%s1 + $0x130] sm:$0xf]
        %v394 = vld [vmem:[%s1 + $0x134] sm:$0xf]
        %v395 = vld [vmem:[%s1 + $0x138] sm:$0xf]
        %v396 = vld [vmem:[%s1 + $0x13c] sm:$0xf]
        %v397 = vld [vmem:[%s1 + $0x140] sm:$0xf]
        %v398 = vld [vmem:[%s1 + $0x144] sm:$0xf]
        %v399 = vld [vmem:[%s1 + $0x148] sm:$0xf]
        %v400 = vld [vmem:[%s1 + $0x14c] sm:$0xf]
        %v401 = vld [vmem:[%s1 + $0x150] sm:$0xf]
        %v402 = vld [vmem:[%s1 + $0x154] sm:$0xf]
        %v403 = vld [vmem:[%s1 + $0x158] sm:$0xf]
        %v404 = vld [vmem:[%s1 + $0x15c] sm:$0xf]
        %v405 = vld [vmem:[%s1 + $0x160] sm:$0xf]
        %v406 = vld [vmem:[%s1 + $0x164] sm:$0xf]
        %v407 = vld [vmem:[%s1 + $0x168] sm:$0xf]
        %v408 = vld [vmem:[%s1 + $0x16c] sm:$0xf]
        %v409 = vld [vmem:[%s1 + $0x170] sm:$0xf]
        %v410 = vld [vmem:[%s1 + $0x174] sm:$0xf]
        %v411 = vld [vmem:[%s1 + $0x178] sm:$0xf]
        %v412 = vld [vmem:[%s1 + $0x17c] sm:$0xf]
        %v509 = vunpack.c.l.b16 %v317
        %v510 = vunpack.c.l.b16 %v318
        %v511 = vunpack.c.l.b16 %v319
        %v512 = vunpack.c.l.b16 %v320
        %v513 = vunpack.c.l.b16 %v321
        %v514 = vunpack.c.l.b16 %v322
        %v515 = vunpack.c.l.b16 %v323
        %v516 = vunpack.c.l.b16 %v324
        %v517 = vunpack.c.l.b16 %v325
        %v518 = vunpack.c.l.b16 %v326
        %v519 = vunpack.c.l.b16 %v327
        %v520 = vunpack.c.l.b16 %v328
        %v521 = vunpack.c.l.b16 %v329
        %v522 = vunpack.c.l.b16 %v330
        %v523 = vunpack.c.l.b16 %v331
        %v524 = vunpack.c.l.b16 %v332
        %v525 = vunpack.c.l.b16 %v333
        %v526 = vunpack.c.l.b16 %v334
        %v527 = vunpack.c.l.b16 %v335
        %v528 = vunpack.c.l.b16 %v336
        %v529 = vunpack.c.l.b16 %v337
        %v530 = vunpack.c.l.b16 %v338
        %v531 = vunpack.c.l.b16 %v339
        %v532 = vunpack.c.l.b16 %v340
        %v533 = vunpack.c.l.b16 %v341
        %v534 = vunpack.c.l.b16 %v342
        %v535 = vunpack.c.l.b16 %v343
        %v536 = vunpack.c.l.b16 %v344
        %v537 = vunpack.c.l.b16 %v345
        %v538 = vunpack.c.l.b16 %v346
        %v539 = vunpack.c.l.b16 %v347
        %v540 = vunpack.c.l.b16 %v348
        %v541 = vunpack.c.l.b16 %v349
        %v542 = vunpack.c.l.b16 %v350
        %v543 = vunpack.c.l.b16 %v351
        %v544 = vunpack.c.l.b16 %v352
        %v545 = vunpack.c.l.b16 %v353
        %v546 = vunpack.c.l.b16 %v354
        %v547 = vunpack.c.l.b16 %v355
        %v548 = vunpack.c.l.b16 %v356
        %v549 = vunpack.c.l.b16 %v357
        %v550 = vunpack.c.l.b16 %v358
        %v551 = vunpack.c.l.b16 %v359
        %v552 = vunpack.c.l.b16 %v360
        %v553 = vunpack.c.l.b16 %v361
        %v554 = vunpack.c.l.b16 %v362
        %v555 = vunpack.c.l.b16 %v363
        %v556 = vunpack.c.l.b16 %v364
        %v557 = vunpack.c.l.b16 %v365
        %v558 = vunpack.c.l.b16 %v366
        %v559 = vunpack.c.l.b16 %v367
        %v560 = vunpack.c.l.b16 %v368
        %v561 = vunpack.c.l.b16 %v369
        %v562 = vunpack.c.l.b16 %v370
        %v563 = vunpack.c.l.b16 %v371
        %v564 = vunpack.c.l.b16 %v372
        %v565 = vunpack.c.l.b16 %v373
        %v566 = vunpack.c.l.b16 %v374
        %v567 = vunpack.c.l.b16 %v375
        %v568 = vunpack.c.l.b16 %v376
        %v569 = vunpack.c.l.b16 %v377
        %v570 = vunpack.c.l.b16 %v378
        %v571 = vunpack.c.l.b16 %v379
        %v572 = vunpack.c.l.b16 %v380
        %v573 = vunpack.c.l.b16 %v381
        %v574 = vunpack.c.l.b16 %v382
        %v575 = vunpack.c.l.b16 %v383
        %v576 = vunpack.c.l.b16 %v384
        %v577 = vunpack.c.l.b16 %v385
        %v578 = vunpack.c.l.b16 %v386
        %v579 = vunpack.c.l.b16 %v387
        %v580 = vunpack.c.l.b16 %v388
        %v581 = vunpack.c.l.b16 %v389
        %v582 = vunpack.c.l.b16 %v390
        %v583 = vunpack.c.l.b16 %v391
        %v584 = vunpack.c.l.b16 %v392
        %v585 = vunpack.c.l.b16 %v393
        %v586 = vunpack.c.l.b16 %v394
        %v587 = vunpack.c.l.b16 %v395
        %v588 = vunpack.c.l.b16 %v396
        %v589 = vunpack.c.l.b16 %v397
        %v590 = vunpack.c.l.b16 %v398
        %v591 = vunpack.c.l.b16 %v399
        %v592 = vunpack.c.l.b16 %v400
        %v593 = vunpack.c.l.b16 %v401
        %v594 = vunpack.c.l.b16 %v402
        %v595 = vunpack.c.l.b16 %v403
        %v596 = vunpack.c.l.b16 %v404
        %v597 = vunpack.c.l.b16 %v405
        %v598 = vunpack.c.l.b16 %v406
        %v599 = vunpack.c.l.b16 %v407
        %v600 = vunpack.c.l.b16 %v408
        %v601 = vunpack.c.l.b16 %v409
        %v602 = vunpack.c.l.b16 %v410
        %v603 = vunpack.c.l.b16 %v411
        %v604 = vunpack.c.l.b16 %v412
        %v605 = vpack.c.b16 %v510, %v509
        %v606 = vpack.c.b16 %v512, %v511
        %v607 = vpack.c.b16 %v514, %v513
        %v608 = vpack.c.b16 %v516, %v515
        %v609 = vpack.c.b16 %v518, %v517
        %v610 = vpack.c.b16 %v520, %v519
        %v611 = vpack.c.b16 %v522, %v521
        %v612 = vpack.c.b16 %v524, %v523
        %v613 = vpack.c.b16 %v526, %v525
        %v614 = vpack.c.b16 %v528, %v527
        %v615 = vpack.c.b16 %v530, %v529
        %v616 = vpack.c.b16 %v532, %v531
        %v617 = vpack.c.b16 %v534, %v533
        %v618 = vpack.c.b16 %v536, %v535
        %v619 = vpack.c.b16 %v538, %v537
        %v620 = vpack.c.b16 %v540, %v539
        %v621 = vpack.c.b16 %v542, %v541
        %v622 = vpack.c.b16 %v544, %v543
        %v623 = vpack.c.b16 %v546, %v545
        %v624 = vpack.c.b16 %v548, %v547
        %v625 = vpack.c.b16 %v550, %v549
        %v626 = vpack.c.b16 %v552, %v551
        %v627 = vpack.c.b16 %v554, %v553
        %v628 = vpack.c.b16 %v556, %v555
        %v629 = vpack.c.b16 %v558, %v557
        %v630 = vpack.c.b16 %v560, %v559
        %v631 = vpack.c.b16 %v562, %v561
        %v632 = vpack.c.b16 %v564, %v563
        %v633 = vpack.c.b16 %v566, %v565
        %v634 = vpack.c.b16 %v568, %v567
        %v635 = vpack.c.b16 %v570, %v569
        %v636 = vpack.c.b16 %v572, %v571
        %v637 = vpack.c.b16 %v574, %v573
        %v638 = vpack.c.b16 %v576, %v575
        %v639 = vpack.c.b16 %v578, %v577
        %v640 = vpack.c.b16 %v580, %v579
        %v641 = vpack.c.b16 %v582, %v581
        %v642 = vpack.c.b16 %v584, %v583
        %v643 = vpack.c.b16 %v586, %v585
        %v644 = vpack.c.b16 %v588, %v587
        %v645 = vpack.c.b16 %v590, %v589
        %v646 = vpack.c.b16 %v592, %v591
        %v647 = vpack.c.b16 %v594, %v593
        %v648 = vpack.c.b16 %v596, %v595
        %v649 = vpack.c.b16 %v598, %v597
        %v650 = vpack.c.b16 %v600, %v599
        %v651 = vpack.c.b16 %v602, %v601
        %v652 = vpack.c.b16 %v604, %v603
        %701 = vmatpush.bf16.msra.mxu0 %v612
        %702 = vmatpush.bf16.msra.mxu0 %v611
        %703 = vmatpush.bf16.msra.mxu0 %v610
        %704 = vmatpush.bf16.msra.mxu0 %v609
        %705 = vmatpush.bf16.msra.mxu0 %v608
        %706 = vmatpush.bf16.msra.mxu0 %v607
        %707 = vmatpush.bf16.msra.mxu0 %v606
        %708 = vmatpush.bf16.msra.mxu0 %v605
        %709 = vmatmul.bf16.gmra.mxu0 %v305
        %v710 = vpop.f32.mrf.mxu0
        %v711 = vadd.f32 0.0, %v710
        %v712 = vpop.f32.mrf.mxu0
        %v713 = vadd.f32 0.0, %v712
        %714 = vmatmul.bf16.gmra.mxu0 %v311
        %v715 = vpop.f32.mrf.mxu0
        %v716 = vadd.f32 0.0, %v715
        %v717 = vpop.f32.mrf.mxu0
        %718 = vdwg.mxu0
        %719 = vmatpush.bf16.msra.mxu0 %v620
        %720 = vmatpush.bf16.msra.mxu0 %v619
        %721 = vmatpush.bf16.msra.mxu0 %v618
        %722 = vmatpush.bf16.msra.mxu0 %v617
        %723 = vmatpush.bf16.msra.mxu0 %v616
        %724 = vmatpush.bf16.msra.mxu0 %v615
        %725 = vmatpush.bf16.msra.mxu0 %v614
        %726 = vmatpush.bf16.msra.mxu0 %v613
        %727 = vmatmul.bf16.gmra.mxu0 %v306
        %v728 = vpop.f32.mrf.mxu0
        %v729 = vadd.f32 %v711, %v728
        %v730 = vpop.f32.mrf.mxu0
        %v731 = vadd.f32 %v713, %v730
        %732 = vmatmul.bf16.gmra.mxu0 %v312
        %v733 = vpop.f32.mrf.mxu0
        %v734 = vadd.f32 %v716, %v733
        %v735 = vpop.f32.mrf.mxu0
        %736 = vdwg.mxu0
        %737 = vmatpush.bf16.msra.mxu0 %v628
        %738 = vmatpush.bf16.msra.mxu0 %v627
        %739 = vmatpush.bf16.msra.mxu0 %v626
        %740 = vmatpush.bf16.msra.mxu0 %v625
        %741 = vmatpush.bf16.msra.mxu0 %v624
        %742 = vmatpush.bf16.msra.mxu0 %v623
        %743 = vmatpush.bf16.msra.mxu0 %v622
        %744 = vmatpush.bf16.msra.mxu0 %v621
        %745 = vmatmul.bf16.gmra.mxu0 %v307
        %v746 = vpop.f32.mrf.mxu0
        %v747 = vadd.f32 %v729, %v746
        %v748 = vpop.f32.mrf.mxu0
        %v749 = vadd.f32 %v731, %v748
        %750 = vmatmul.bf16.gmra.mxu0 %v313
        %v751 = vpop.f32.mrf.mxu0
        %v752 = vadd.f32 %v734, %v751
        %v753 = vpop.f32.mrf.mxu0
        %754 = vdwg.mxu0
        %755 = vmatpush.bf16.msra.mxu0 %v636
        %756 = vmatpush.bf16.msra.mxu0 %v635
        %757 = vmatpush.bf16.msra.mxu0 %v634
        %758 = vmatpush.bf16.msra.mxu0 %v633
        %759 = vmatpush.bf16.msra.mxu0 %v632
        %760 = vmatpush.bf16.msra.mxu0 %v631
        %761 = vmatpush.bf16.msra.mxu0 %v630
        %762 = vmatpush.bf16.msra.mxu0 %v629
        %763 = vmatmul.bf16.gmra.mxu0 %v308
        %v764 = vpop.f32.mrf.mxu0
        %v765 = vadd.f32 %v747, %v764
        %v766 = vpop.f32.mrf.mxu0
        %v767 = vadd.f32 %v749, %v766
        %768 = vmatmul.bf16.gmra.mxu0 %v314
        %v769 = vpop.f32.mrf.mxu0
        %v770 = vadd.f32 %v752, %v769
        %v771 = vpop.f32.mrf.mxu0
        %772 = vdwg.mxu0
        %773 = vmatpush.bf16.msra.mxu0 %v644
        %774 = vmatpush.bf16.msra.mxu0 %v643
        %775 = vmatpush.bf16.msra.mxu0 %v642
        %776 = vmatpush.bf16.msra.mxu0 %v641
        %777 = vmatpush.bf16.msra.mxu0 %v640
        %778 = vmatpush.bf16.msra.mxu0 %v639
        %779 = vmatpush.bf16.msra.mxu0 %v638
        %780 = vmatpush.bf16.msra.mxu0 %v637
        %781 = vmatmul.bf16.gmra.mxu0 %v309
        %v782 = vpop.f32.mrf.mxu0
        %v783 = vadd.f32 %v765, %v782
        %v784 = vpop.f32.mrf.mxu0
        %v785 = vadd.f32 %v767, %v784
        %786 = vmatmul.bf16.gmra.mxu0 %v315
        %v787 = vpop.f32.mrf.mxu0
        %v788 = vadd.f32 %v770, %v787
        %v789 = vpop.f32.mrf.mxu0
        %790 = vdwg.mxu0
        %791 = vmatpush.bf16.msra.mxu0 %v652
        %792 = vmatpush.bf16.msra.mxu0 %v651
        %793 = vmatpush.bf16.msra.mxu0 %v650
        %794 = vmatpush.bf16.msra.mxu0 %v649
        %795 = vmatpush.bf16.msra.mxu0 %v648
        %796 = vmatpush.bf16.msra.mxu0 %v647
        %797 = vmatpush.bf16.msra.mxu0 %v646
        %798 = vmatpush.bf16.msra.mxu0 %v645
        %799 = vmatmul.bf16.gmra.mxu0 %v310
        %v800 = vpop.f32.mrf.mxu0
        %v801 = vadd.f32 %v783, %v800
        %v802 = vpop.f32.mrf.mxu0
        %v803 = vadd.f32 %v785, %v802
        %804 = vmatmul.bf16.gmra.mxu0 %v316
        %v805 = vpop.f32.mrf.mxu0
        %v806 = vadd.f32 %v788, %v805
        %v807 = vpop.f32.mrf.mxu0
        %808 = vdwg.mxu0
        %v809 = vperm.slane %v801, 0
        %v810 = vmul.f32 %v801, %v809
        %v811 = vmul.f32 %v803, %v809
        %v812 = vmul.f32 %v806, %v809
        %vm813 = vcmask 261121
        %v814 = vsel %vm813, %v810, 0.0
        %815 = vadd.xlane.f32.xlu0 %v814
        %v816 = vpop.xlane.xlu0 %815
        %vm817 = vcmask 261120
        %v818 = vsel %vm817, %v811, 0.0
        %819 = vadd.xlane.f32.xlu0 %v818
        %v820 = vpop.xlane.xlu0 %819
        %vm821 = vcmask 253952
        %v822 = vsel %vm821, %v812, 0.0
        %823 = vadd.xlane.f32.xlu0 %v822
        %v824 = vpop.xlane.xlu0 %823
        %v825 = vmul.f32 %v801, %v801
        %v826 = vsel %vm821, %v825, 0.0
        %827 = vadd.xlane.f32.xlu0 %v826
        %v828 = vpop.xlane.xlu0 %827
        %v829 = vrsqrt.pop %v828
        %v830 = vmul.f32 %v829, %v828
        %v831 = vmul.f32 %v830, %v829
        %v832 = vmul.f32 0.5, %v831
        %v833 = vsub.f32 1.5, %v832
        %v834 = vmul.f32 %v829, %v833
        %v835 = vmul.f32 %v828, %v834
        %vm836 = vcmp.eq.f32.partialorder %v828, inf
        %v837 = vsel %vm836, %v828, %v835
        %vm838 = vcmp.eq.f32.partialorder %v828, 0.0
        %v839 = vand.u32 %v828, 2147483648
        %v840 = vsel %vm838, %v839, %v837
        %v841 = vmul.f32 %v803, %v803
        %v842 = vmul.f32 %v806, %v806
        %v843 = vsel %vm813, %v825, 0.0
        %844 = vadd.xlane.f32.xlu0 %v843
        %v845 = vpop.xlane.xlu0 %844
        %v846 = vsel %vm817, %v841, 0.0
        %847 = vadd.xlane.f32.xlu0 %v846
        %v848 = vpop.xlane.xlu0 %847
        %v849 = vsel %vm821, %v842, 0.0
        %850 = vadd.xlane.f32.xlu0 %v849
        %v851 = vpop.xlane.xlu0 %850
        %v852 = vrsqrt.pop %v845
        %v853 = vmul.f32 %v852, %v845
        %v854 = vmul.f32 %v853, %v852
        %v855 = vmul.f32 0.5, %v854
        %v856 = vsub.f32 1.5, %v855
        %v857 = vmul.f32 %v852, %v856
        %v858 = vmul.f32 %v845, %v857
        %vm859 = vcmp.eq.f32.partialorder %v845, inf
        %v860 = vsel %vm859, %v845, %v858
        %vm861 = vcmp.eq.f32.partialorder %v845, 0.0
        %v862 = vand.u32 %v845, 2147483648
        %v863 = vsel %vm861, %v862, %v860
        %v864 = vrsqrt.pop %v848
        %v865 = vmul.f32 %v864, %v848
        %v866 = vmul.f32 %v865, %v864
        %v867 = vmul.f32 0.5, %v866
        %v868 = vsub.f32 1.5, %v867
        %v869 = vmul.f32 %v864, %v868
        %v870 = vmul.f32 %v848, %v869
        %vm871 = vcmp.eq.f32.partialorder %v848, inf
        %v872 = vsel %vm871, %v848, %v870
        %vm873 = vcmp.eq.f32.partialorder %v848, 0.0
        %v874 = vand.u32 %v848, 2147483648
        %v875 = vsel %vm873, %v874, %v872
        %v876 = vrsqrt.pop %v851
        %v877 = vmul.f32 %v876, %v851
        %v878 = vmul.f32 %v877, %v876
        %v879 = vmul.f32 0.5, %v878
        %v880 = vsub.f32 1.5, %v879
        %v881 = vmul.f32 %v876, %v880
        %v882 = vmul.f32 %v851, %v881
        %vm883 = vcmp.eq.f32.partialorder %v851, inf
        %v884 = vsel %vm883, %v851, %v882
        %vm885 = vcmp.eq.f32.partialorder %v851, 0.0
        %v886 = vand.u32 %v851, 2147483648
        %v887 = vsel %vm885, %v886, %v884
        %v888 = vmax.f32 %v840, 1e-08
        %v889 = vmax.f32 %v863, 1e-08
        %v890 = vmax.f32 %v875, 1e-08
        %v891 = vmax.f32 %v887, 1e-08
        %v892 = vperm.slane %v888, 0
        %v893 = vmul.f32 %v892, %v889
        %v894 = vmul.f32 %v892, %v890
        %v895 = vmul.f32 %v892, %v891
        %v896 = vrcp.pop %v893
        %v897 = vmul.f32 %v893, %v896
        %v898 = vsub.f32 1.0, %v897
        %v899 = vmul.f32 %v896, %v898
        %v900 = vadd.f32 %v896, %v899
        %vm901 = vweird.f32 %v893
        %vm902 = vweird.f32 %v896
        %vm903 = vmor %vm901, %vm902
        %v904 = vsel %vm903, %v896, %v900
        %v905 = vand.u32 2147483647, %v893
        %vm906 = vcmp.eq.f32.partialorder %v905, 8.507059e+37
        %v907 = vand.u32 %v893, 2147483648
        %v908 = vor.u32 1.1754944e-38, %v907
        %v909 = vsel %vm906, %v908, %v904
        %v910 = vmul.f32 %v816, %v909
        %v911 = vrcp.pop %v894
        %v912 = vmul.f32 %v894, %v911
        %v913 = vsub.f32 1.0, %v912
        %v914 = vmul.f32 %v911, %v913
        %v915 = vadd.f32 %v911, %v914
        %vm916 = vweird.f32 %v894
        %vm917 = vweird.f32 %v911
        %vm918 = vmor %vm916, %vm917
        %v919 = vsel %vm918, %v911, %v915
        %v920 = vand.u32 2147483647, %v894
        %vm921 = vcmp.eq.f32.partialorder %v920, 8.507059e+37
        %v922 = vand.u32 %v894, 2147483648
        %v923 = vor.u32 1.1754944e-38, %v922
        %v924 = vsel %vm921, %v923, %v919
        %v925 = vmul.f32 %v820, %v924
        %v926 = vrcp.pop %v895
        %v927 = vmul.f32 %v895, %v926
        %v928 = vsub.f32 1.0, %v927
        %v929 = vmul.f32 %v926, %v928
        %v930 = vadd.f32 %v926, %v929
        %vm931 = vweird.f32 %v895
        %vm932 = vweird.f32 %v926
        %vm933 = vmor %vm931, %vm932
        %v934 = vsel %vm933, %v926, %v930
        %v935 = vand.u32 2147483647, %v895
        %vm936 = vcmp.eq.f32.partialorder %v935, 8.507059e+37
        %v937 = vand.u32 %v895, 2147483648
        %v938 = vor.u32 1.1754944e-38, %v937
        %v939 = vsel %vm936, %v938, %v934
        %v940 = vmul.f32 %v824, %v939
        %v941 = vld [vmem:[#allocation2] sm:$0x3]
        %v942 = vld [vmem:[#allocation4] sm:$0x3]
        %v943 = vld [vmem:[#allocation6] sm:$0x3]
        %v944 = vld [vmem:[%s253] sm:$0x3]
        %v945 = vadd.f32 %v943, %v944
        %v946 = vperm.slane %v910, 1
        %v947 = vsub.f32 %v946, %v941
        %v948 = vmul.f32 %v944, %v947
        %v949 = vrcp.pop %v945
        %v950 = vmul.f32 %v948, %v949
        %v951 = vadd.f32 %v941, %v950
        %v952 = vsub.f32 %v946, %v951
        %v953 = vmul.f32 %v952, %v947
        %v954 = vmul.f32 %v953, %v944
        %v955 = vadd.f32 %v942, %v954
        %s956 = scalar_lea.vmem %s253, 2
        %v957 = vld [vmem:[%s956] sm:$0x3]
        %v958 = vadd.f32 %v945, %v957
        %v959 = vperm.slane %v910, 2
        %v960 = vsub.f32 %v959, %v951
        %v961 = vmul.f32 %v957, %v960
        %v962 = vrcp.pop %v958
        %v963 = vmul.f32 %v961, %v962
        %v964 = vadd.f32 %v951, %v963
        %v965 = vsub.f32 %v959, %v964
        %v966 = vmul.f32 %v965, %v960
        %v967 = vmul.f32 %v966, %v957
        %v968 = vadd.f32 %v955, %v967
        %s969 = scalar_lea.vmem %s253, 4
        %v970 = vld [vmem:[%s969] sm:$0x3]
        %v971 = vadd.f32 %v958, %v970
        %v972 = vperm.slane %v910, 3
        %v973 = vsub.f32 %v972, %v964
        %v974 = vmul.f32 %v970, %v973
        %v975 = vrcp.pop %v971
        %v976 = vmul.f32 %v974, %v975
        %v977 = vadd.f32 %v964, %v976
        %v978 = vsub.f32 %v972, %v977
        %v979 = vmul.f32 %v978, %v973
        %v980 = vmul.f32 %v979, %v970
        %v981 = vadd.f32 %v968, %v980
        %s982 = scalar_lea.vmem %s253, 6
        %v983 = vld [vmem:[%s982] sm:$0x3]
        %v984 = vadd.f32 %v971, %v983
        %v985 = vperm.slane %v910, 4
        %v986 = vsub.f32 %v985, %v977
        %v987 = vmul.f32 %v983, %v986
        %v988 = vrcp.pop %v984
        %v989 = vmul.f32 %v987, %v988
        %v990 = vadd.f32 %v977, %v989
        %v991 = vsub.f32 %v985, %v990
        %v992 = vmul.f32 %v991, %v986
        %v993 = vmul.f32 %v992, %v983
        %v994 = vadd.f32 %v981, %v993
        %s995 = scalar_lea.vmem %s253, 8
        %v996 = vld [vmem:[%s995] sm:$0x3]
        %v997 = vadd.f32 %v984, %v996
        %v998 = vperm.slane %v910, 5
        %v999 = vsub.f32 %v998, %v990
        %v1000 = vmul.f32 %v996, %v999
        %v1001 = vrcp.pop %v997
        %v1002 = vmul.f32 %v1000, %v1001
        %v1003 = vadd.f32 %v990, %v1002
        %v1004 = vsub.f32 %v998, %v1003
        %v1005 = vmul.f32 %v1004, %v999
        %v1006 = vmul.f32 %v1005, %v996
        %v1007 = vadd.f32 %v994, %v1006
        %s1008 = scalar_lea.vmem %s253, 10
        %v1009 = vld [vmem:[%s1008] sm:$0x3]
        %v1010 = vadd.f32 %v997, %v1009
        %v1011 = vperm.slane %v910, 6
        %v1012 = vsub.f32 %v1011, %v1003
        %v1013 = vmul.f32 %v1009, %v1012
        %v1014 = vrcp.pop %v1010
        %v1015 = vmul.f32 %v1013, %v1014
        %v1016 = vadd.f32 %v1003, %v1015
        %v1017 = vsub.f32 %v1011, %v1016
        %v1018 = vmul.f32 %v1017, %v1012
        %v1019 = vmul.f32 %v1018, %v1009
        %v1020 = vadd.f32 %v1007, %v1019
        %s1021 = scalar_lea.vmem %s253, 12
        %v1022 = vld [vmem:[%s1021] sm:$0x3]
        %v1023 = vadd.f32 %v1010, %v1022
        %v1024 = vperm.slane %v910, 7
        %v1025 = vsub.f32 %v1024, %v1016
        %v1026 = vmul.f32 %v1022, %v1025
        %v1027 = vrcp.pop %v1023
        %v1028 = vmul.f32 %v1026, %v1027
        %v1029 = vadd.f32 %v1016, %v1028
        %v1030 = vsub.f32 %v1024, %v1029
        %v1031 = vmul.f32 %v1030, %v1025
        %v1032 = vmul.f32 %v1031, %v1022
        %v1033 = vadd.f32 %v1020, %v1032
        %s1034 = scalar_lea.vmem %s253, 14
        %v1035 = vld [vmem:[%s1034] sm:$0x3]
        %v1036 = vadd.f32 %v1023, %v1035
        %v1037 = vperm.slane %v925, 0
        %v1038 = vsub.f32 %v1037, %v1029
        %v1039 = vmul.f32 %v1035, %v1038
        %v1040 = vrcp.pop %v1036
        %v1041 = vmul.f32 %v1039, %v1040
        %v1042 = vadd.f32 %v1029, %v1041
        %v1043 = vsub.f32 %v1037, %v1042
        %v1044 = vmul.f32 %v1043, %v1038
        %v1045 = vmul.f32 %v1044, %v1035
        %v1046 = vadd.f32 %v1033, %v1045
        %s1047 = scalar_lea.vmem %s253, 16
        %v1048 = vld [vmem:[%s1047] sm:$0x3]
        %v1049 = vadd.f32 %v1036, %v1048
        %v1050 = vperm.slane %v925, 1
        %v1051 = vsub.f32 %v1050, %v1042
        %v1052 = vmul.f32 %v1048, %v1051
        %v1053 = vrcp.pop %v1049
        %v1054 = vmul.f32 %v1052, %v1053
        %v1055 = vadd.f32 %v1042, %v1054
        %v1056 = vsub.f32 %v1050, %v1055
        %v1057 = vmul.f32 %v1056, %v1051
        %v1058 = vmul.f32 %v1057, %v1048
        %v1059 = vadd.f32 %v1046, %v1058
        %s1060 = scalar_lea.vmem %s253, 18
        %v1061 = vld [vmem:[%s1060] sm:$0x3]
        %v1062 = vadd.f32 %v1049, %v1061
        %v1063 = vperm.slane %v925, 2
        %v1064 = vsub.f32 %v1063, %v1055
        %v1065 = vmul.f32 %v1061, %v1064
        %v1066 = vrcp.pop %v1062
        %v1067 = vmul.f32 %v1065, %v1066
        %v1068 = vadd.f32 %v1055, %v1067
        %v1069 = vsub.f32 %v1063, %v1068
        %v1070 = vmul.f32 %v1069, %v1064
        %v1071 = vmul.f32 %v1070, %v1061
        %v1072 = vadd.f32 %v1059, %v1071
        %s1073 = scalar_lea.vmem %s253, 20
        %v1074 = vld [vmem:[%s1073] sm:$0x3]
        %v1075 = vadd.f32 %v1062, %v1074
        %v1076 = vperm.slane %v925, 3
        %v1077 = vsub.f32 %v1076, %v1068
        %v1078 = vmul.f32 %v1074, %v1077
        %v1079 = vrcp.pop %v1075
        %v1080 = vmul.f32 %v1078, %v1079
        %v1081 = vadd.f32 %v1068, %v1080
        %v1082 = vsub.f32 %v1076, %v1081
        %v1083 = vmul.f32 %v1082, %v1077
        %v1084 = vmul.f32 %v1083, %v1074
        %v1085 = vadd.f32 %v1072, %v1084
        %s1086 = scalar_lea.vmem %s253, 22
        %v1087 = vld [vmem:[%s1086] sm:$0x3]
        %v1088 = vadd.f32 %v1075, %v1087
        %v1089 = vperm.slane %v925, 4
        %v1090 = vsub.f32 %v1089, %v1081
        %v1091 = vmul.f32 %v1087, %v1090
        %v1092 = vrcp.pop %v1088
        %v1093 = vmul.f32 %v1091, %v1092
        %v1094 = vadd.f32 %v1081, %v1093
        %v1095 = vsub.f32 %v1089, %v1094
        %v1096 = vmul.f32 %v1095, %v1090
        %v1097 = vmul.f32 %v1096, %v1087
        %v1098 = vadd.f32 %v1085, %v1097
        %s1099 = scalar_lea.vmem %s253, 24
        %v1100 = vld [vmem:[%s1099] sm:$0x3]
        %v1101 = vadd.f32 %v1088, %v1100
        %v1102 = vperm.slane %v925, 5
        %v1103 = vsub.f32 %v1102, %v1094
        %v1104 = vmul.f32 %v1100, %v1103
        %v1105 = vrcp.pop %v1101
        %v1106 = vmul.f32 %v1104, %v1105
        %v1107 = vadd.f32 %v1094, %v1106
        %v1108 = vsub.f32 %v1102, %v1107
        %v1109 = vmul.f32 %v1108, %v1103
        %v1110 = vmul.f32 %v1109, %v1100
        %v1111 = vadd.f32 %v1098, %v1110
        %s1112 = scalar_lea.vmem %s253, 26
        %v1113 = vld [vmem:[%s1112] sm:$0x3]
        %v1114 = vadd.f32 %v1101, %v1113
        %v1115 = vperm.slane %v925, 6
        %v1116 = vsub.f32 %v1115, %v1107
        %v1117 = vmul.f32 %v1113, %v1116
        %v1118 = vrcp.pop %v1114
        %v1119 = vmul.f32 %v1117, %v1118
        %v1120 = vadd.f32 %v1107, %v1119
        %v1121 = vsub.f32 %v1115, %v1120
        %v1122 = vmul.f32 %v1121, %v1116
        %v1123 = vmul.f32 %v1122, %v1113
        %v1124 = vadd.f32 %v1111, %v1123
        %s1125 = scalar_lea.vmem %s253, 28
        %v1126 = vld [vmem:[%s1125] sm:$0x3]
        %v1127 = vadd.f32 %v1114, %v1126
        %v1128 = vperm.slane %v925, 7
        %v1129 = vsub.f32 %v1128, %v1120
        %v1130 = vmul.f32 %v1126, %v1129
        %v1131 = vrcp.pop %v1127
        %v1132 = vmul.f32 %v1130, %v1131
        %v1133 = vadd.f32 %v1120, %v1132
        %v1134 = vsub.f32 %v1128, %v1133
        %v1135 = vmul.f32 %v1134, %v1129
        %v1136 = vmul.f32 %v1135, %v1126
        %v1137 = vadd.f32 %v1124, %v1136
        %s1138 = scalar_lea.vmem %s253, 30
        %v1139 = vld [vmem:[%s1138] sm:$0x3]
        %v1140 = vadd.f32 %v1127, %v1139
        %v1141 = vperm.slane %v940, 0
        %v1142 = vsub.f32 %v1141, %v1133
        %v1143 = vmul.f32 %v1139, %v1142
        %v1144 = vrcp.pop %v1140
        %v1145 = vmul.f32 %v1143, %v1144
        %v1146 = vadd.f32 %v1133, %v1145
        %v1147 = vsub.f32 %v1141, %v1146
        %v1148 = vmul.f32 %v1147, %v1142
        %v1149 = vmul.f32 %v1148, %v1139
        %v1150 = vadd.f32 %v1137, %v1149
        %1151 = vst [vmem:[#allocation2] sm:$0x3] %v1146
        %1152 = vst [vmem:[#allocation4] sm:$0x3] %v1150
        %1153 = vst [vmem:[#allocation6] sm:$0x3] %v1140
        // Predicated region
        $region41: #{tpu_custom_call.1} parent=35 // pred_check
          %p1154 = pneg %p127
        $region42: #{tpu_custom_call.1} parent=35 // pred_check_branch
          %1156 = sbr.rel (%p1154) target = $region44
        $region43: #{tpu_custom_call.1} parent=35 // pred_region
          %1158 = vsyncadd [#allocation3], 0
          %s1160 = sshll.u32 [#allocation2], 4
          %s1161 = int_to_ptr.vmem [resolvable:$true] %s1160
          %s1162 = sshll.u32 %s4, 4
          %s1163 = int_to_ptr.hbm [resolvable:$true] %s1162
          %1165 = dma.vmem_to_hbm [thread:$0]  %s1161, 32, %s1163, [#allocation3]
        $region44: #{tpu_custom_call.1} parent=35 // pred_fallthru
          _
        // Predicated region
        $region45: #{tpu_custom_call.1} parent=35 // pred_check
          %p1166 = pneg %p148
        $region46: #{tpu_custom_call.1} parent=35 // pred_check_branch
          %1168 = sbr.rel (%p1166) target = $region48
        $region47: #{tpu_custom_call.1} parent=35 // pred_region
          %1170 = vsyncadd [#allocation5], 0
          %s1172 = sshll.u32 [#allocation4], 4
          %s1173 = int_to_ptr.vmem [resolvable:$true] %s1172
          %s1174 = sshll.u32 %s5, 4
          %s1175 = int_to_ptr.hbm [resolvable:$true] %s1174
          %1177 = dma.vmem_to_hbm [thread:$0]  %s1173, 32, %s1175, [#allocation5]
        $region48: #{tpu_custom_call.1} parent=35 // pred_fallthru
          _
        // Predicated region
        $region49: #{tpu_custom_call.1} parent=35 // pred_check
          %p1178 = pneg %p169
        $region50: #{tpu_custom_call.1} parent=35 // pred_check_branch
          %1180 = sbr.rel (%p1178) target = $region52
        $region51: #{tpu_custom_call.1} parent=35 // pred_region
          %1182 = vsyncadd [#allocation5], 0
          %s1184 = sshll.u32 [#allocation6], 4
          %s1185 = int_to_ptr.vmem [resolvable:$true] %s1184
          %s1186 = sshll.u32 %s6, 4
          %s1187 = int_to_ptr.hbm [resolvable:$true] %s1186
          %1189 = dma.vmem_to_hbm [thread:$0]  %s1185, 32, %s1187, [#allocation5]
        $region52: #{tpu_custom_call.1} parent=35 // pred_fallthru
          _
        // Predicated region
        $region53: #{tpu_custom_call.1} parent=35 // pred_check
          %p1190 = pneg %p127
        $region54: #{tpu_custom_call.1} parent=35 // pred_check_branch
          %1192 = sbr.rel (%p1190) target = $region56
        $region55: #{tpu_custom_call.1} parent=35 // pred_region
          %1194 = dma.done [#allocation3], 32
        $region56: #{tpu_custom_call.1} parent=35 // pred_fallthru
          _
        // Predicated region
        $region57: #{tpu_custom_call.1} parent=35 // pred_check
          %p1195 = pneg %p148
        $region58: #{tpu_custom_call.1} parent=35 // pred_check_branch
          %1197 = sbr.rel (%p1195) target = $region60
        $region59: #{tpu_custom_call.1} parent=35 // pred_region
          %1199 = dma.done [#allocation5], 32
        $region60: #{tpu_custom_call.1} parent=35 // pred_fallthru
          _
        // Predicated region
        $region61: #{tpu_custom_call.1} parent=35 // pred_check
          %p1200 = pneg %p169
        $region62: #{tpu_custom_call.1} parent=35 // pred_check_branch
          %1202 = sbr.rel (%p1200) target = $region64
        $region63: #{tpu_custom_call.1} parent=35 // pred_region
          %1204 = dma.done [#allocation5], 32
        $region64: #{tpu_custom_call.1} parent=35 // pred_fallthru
          _
      $region36: #{tpu_custom_call.1} parent=5 // pred_fallthru
        _
      %p1205 = scmp.le.s32.totalorder 2, %s15
      // Predicated region
      $region65: #{tpu_custom_call.1} parent=5 // pred_check
        %p1206 = pneg %p1205
      $region66: #{tpu_custom_call.1} parent=5 // pred_check_branch
        %1208 = sbr.rel (%p1206) target = $region68
      $region67: #{tpu_custom_call.1} parent=5 // pred_region
        %s1209 = ssub.s32 %s15, 2
      $region68: #{tpu_custom_call.1} parent=5 // pred_fallthru
        _
    $region6: #{tpu_custom_call.1} parent=1 // loop_footer
      %s19 = sadd.s32 1, %s15
    $region7: #{tpu_custom_call.1} parent=1 // loop_footer_branch
      %14 = sbr.rel target = $region3
    $region8: #{tpu_custom_call.1} parent=1 // loop_exit
      _
    %1210 = vsyncpa [#allocation3], 1
    %s1211 = scalar_lea.sflag [#allocation3], 1
    %1212 = vsyncpa %s1211, 1
    %1213 = vsyncpa [#allocation5], 1

</llo_original>
